<compile_context>
chip_gen: v7x
topology: tpu7x:2x2x1
jax: 0.10.0
libtpu: 0.0.40
codegen_flags: <defaults>
</compile_context>

<pallas_src>
import functools

import numpy as np
import jax
import jax.numpy as jnp
from jax.experimental import pallas as pl
from jax.experimental.pallas import tpu as pltpu


def _fused_cnn_kernel(x_ref, *refs, num_layers, acts):
    """refs = (w1, s1, ..., wN, sN, o_ref).

    x_ref: (1, Bt, Nt*C0) f32; w_i: (Nt*Cin_i, Nt*Cout_i); s_i: (1, Nt*Cout_i).
    o_ref: (1, Bt, Nt*Cout_last).
    """
    o_ref = refs[-1]
    h = x_ref[0]                                   # (Bt, Nt*C0)
    for i in range(num_layers):
        w = refs[2 * i][...]                       # (Nt*Cin, Nt*Cout)
        s = refs[2 * i + 1][...]                   # (1, Nt*Cout)
        h = jnp.dot(h, w, preferred_element_type=jnp.float32) + s
        if acts[i]:
            h = jnp.where(h >= 0, h, 0.3 * h)      # LeakyReLU(negative_slope=0.3)
    o_ref[0] = h.astype(o_ref.dtype)


def _pick_batch_tile(B, target=256):
    """Largest divisor of B <= target; prefer >=2 grid steps (v7x megacore)."""
    divs = [d for d in range(1, B + 1) if B % d == 0 and d <= target]
    pref = [d for d in divs if B // d >= 2]
    pool = pref or divs or [B]
    return max(pool)


def cnn_2d_net_forward(x, fused, Nt, Nr, dk, K):
    """Equivalent of CNN_2D_net.forward (BatchNorm in inference mode).

    x: (B, Nt, Nr*K*2) (or anything reshapeable to it). Returns (B, dk*K*2*Nt).
    """
    C0 = Nr * 2 * K
    C_last = dk * 2 * K
    B = x.shape[0]
    Din = Nt * C0
    Dout = Nt * C_last
    xf = x.reshape(B, Din).astype(jnp.float32)

    Bt = _pick_batch_tile(B)
    G = B // Bt
    x3 = xf.reshape(G, Bt, Din)                    # free leading-dim reshape

    ws, ss, acts = fused["weights"], fused["shifts"], fused["acts"]
    num_layers = len(ws)

    in_specs = [pl.BlockSpec((1, Bt, Din), lambda i: (i, 0, 0))]
    operands = [x3]
    for w, s in zip(ws, ss):
        in_specs.append(pl.BlockSpec(w.shape, lambda i: (0, 0)))   # VMEM-resident
        in_specs.append(pl.BlockSpec(s.shape, lambda i: (0, 0)))
        operands.extend([w, s])

    kern = functools.partial(_fused_cnn_kernel, num_layers=num_layers,
                             acts=tuple(acts))
    out = pl.pallas_call(
        kern,
        out_shape=jax.ShapeDtypeStruct((G, Bt, Dout), jnp.float32),
        grid=(G,),
        in_specs=in_specs,
        out_specs=pl.BlockSpec((1, Bt, Dout), lambda i: (i, 0, 0)),
        compiler_params=pltpu.CompilerParams(
            dimension_semantics=("parallel",),
            vmem_limit_bytes=32 * 1024 * 1024,
        ),
    )(*operands)
    # (G, Bt, Nt*C_last) -> (B, Nt*C_last); already torch's final layout.
    return out.reshape(B, Dout)


def init_params(key, Nt, Nr, dk, K):
    """Deterministic synthetic parameters matching the torch module's shapes."""
    layer_defs = [
        # (Cin, Cout, ksize, has_bn_and_act)
        (Nr * 2 * K, Nr * 4 * K, 7, True),
        (Nr * 4 * K, Nr * 2 * K, 5, True),
        (Nr * 2 * K, Nr * 2 * K, 3, True),
        (Nr * 2 * K, dk * 2 * K, 3, False),
    ]
    params = []
    for (cin, cout, k, has_bn) in layer_defs:
        key, kw, kb, kg, kbe, km, kv = jax.random.split(key, 7)
        bound = 1.0 / np.sqrt(cin * k)
        # torch Conv1d weight is (Cout, Cin, k); store transposed as (k, Cin, Cout)
        w = jax.random.uniform(kw, (k, cin, cout), jnp.float32, -bound, bound)
        b = jax.random.uniform(kb, (cout,), jnp.float32, -bound, bound)
        if has_bn:
            gamma = jax.random.uniform(kg, (cout,), jnp.float32, 0.5, 1.5)
            beta = jax.random.uniform(kbe, (cout,), jnp.float32, -0.2, 0.2)
            rmean = jax.random.uniform(km, (cout,), jnp.float32, -0.1, 0.1)
            rvar = jax.random.uniform(kv, (cout,), jnp.float32, 0.5, 1.5)
            scale = gamma / jnp.sqrt(rvar + 1e-5)
            shift = beta - rmean * scale
        else:
            scale = jnp.ones((cout,), jnp.float32)
            shift = jnp.zeros((cout,), jnp.float32)
        params.append(dict(w=w, b=b, scale=scale, shift=shift, ksize=k,
                           apply_act=has_bn))
    return params


def prepare_fused_params(params, Nt):
    """Host-side, once: fold BN into the conv and lower each 'same' Conv1d to a
    block-Toeplitz matmul over the flattened (time, channel) axis."""
    weights, shifts, acts = [], [], []
    for p in params:
        w = np.asarray(p["w"], np.float32)           # (k, Cin, Cout)
        scale = np.asarray(p["scale"], np.float32)   # (Cout,)
        bias = np.asarray(p["b"], np.float32)
        shift = np.asarray(p["shift"], np.float32)
        k, cin, cout = w.shape
        pad = (k - 1) // 2
        w_s = w * scale[None, None, :]               # BN scale folded into weights
        T = np.zeros((Nt, cin, Nt, cout), np.float32)
        for tout in range(Nt):
            for j in range(k):
                tin = tout + j - pad                 # zero padding absorbed:
                if 0 <= tin < Nt:                    # out-of-range taps stay 0
                    T[tin, :, tout, :] = w_s[j]
        per_c = bias * scale + shift                 # BN shift folded with bias
        weights.append(jnp.asarray(T.reshape(Nt * cin, Nt * cout)))
        shifts.append(jnp.asarray(np.tile(per_c, Nt)[None, :]))   # (1, Nt*Cout)
        acts.append(bool(p["apply_act"]))
    return dict(weights=weights, shifts=shifts, acts=acts)


def _ref_forward(x, params, Nt, Nr, dk, K):
    """Plain-JAX per-tap reference with identical math, used for a sanity check."""
    B = x.shape[0]
    h = x.reshape(B, Nt, Nr * K * 2)
    for p in params:
        k = p["ksize"]
        pad = (k - 1) // 2
        hp = jnp.pad(h, ((0, 0), (pad, pad), (0, 0)))
        L = h.shape[1]
        acc = sum(jnp.einsum("blc,cd->bld", hp[:, j:j + L, :], p["w"][j])
                  for j in range(k))
        y = (acc + p["b"]) * p["scale"] + p["shift"]
        h = jnp.where(y >= 0, y, 0.3 * y) if p["apply_act"] else y
    return h.reshape(B, Nt * dk * K * 2)


if __name__ == "__main__":
    # Small shapes: Nt=16, Nr=4, dk=2, K=2 -> Cin=16, hidden=32/16/16, Cout=8
    Nt, Nr, dk, K = 16, 4, 2, 2
    B = 2

    key = jax.random.PRNGKey(0)
    kx, kp = jax.random.split(key)
    x = jax.random.normal(kx, (B, Nt, Nr * K * 2), jnp.float32)
    params = init_params(kp, Nt, Nr, dk, K)
    fused = prepare_fused_params(params, Nt)

    out = cnn_2d_net_forward(x, fused, Nt, Nr, dk, K)
    out = jax.block_until_ready(out)

    ref = _ref_forward(x, params, Nt, Nr, dk, K)
    assert out.shape == (B, dk * K * 2 * Nt), out.shape
    assert jnp.allclose(out, ref, atol=1e-4, rtol=1e-4), "mismatch vs reference"

    print("KERNEL_OK")
</pallas_src>

<mosaic_0001>
module attributes {stable_mosaic.version = 11 : i64} {
  func.func @_fused_cnn_kernel(%arg0: i32, %arg1: memref<1x1x256xf32, #tpu.memory_space<vmem>>, %arg2: memref<256x512xf32, #tpu.memory_space<vmem>>, %arg3: memref<1x512xf32, #tpu.memory_space<vmem>>, %arg4: memref<512x256xf32, #tpu.memory_space<vmem>>, %arg5: memref<1x256xf32, #tpu.memory_space<vmem>>, %arg6: memref<256x256xf32, #tpu.memory_space<vmem>>, %arg7: memref<1x256xf32, #tpu.memory_space<vmem>>, %arg8: memref<256x128xf32, #tpu.memory_space<vmem>>, %arg9: memref<1x128xf32, #tpu.memory_space<vmem>>, %arg10: memref<1x1x128xf32, #tpu.memory_space<vmem>>) attributes {dimension_semantics = [#tpu.dimension_semantics<parallel>], iteration_bounds = array<i64: 2>, scalar_prefetch = 0 : i64, scratch_operands = 0 : i64, tpu.core_type = #tpu.core_type<tc>, window_params = [{transform_indices = @transform_0, window_bounds = array<i64: 1, 1, 256>}, {pipeline_mode = #tpu.pipeline_mode<synchronous>, transform_indices = @transform_1, window_bounds = array<i64: 256, 512>}, {pipeline_mode = #tpu.pipeline_mode<synchronous>, transform_indices = @transform_2, window_bounds = array<i64: 1, 512>}, {pipeline_mode = #tpu.pipeline_mode<synchronous>, transform_indices = @transform_3, window_bounds = array<i64: 512, 256>}, {pipeline_mode = #tpu.pipeline_mode<synchronous>, transform_indices = @transform_4, window_bounds = array<i64: 1, 256>}, {pipeline_mode = #tpu.pipeline_mode<synchronous>, transform_indices = @transform_5, window_bounds = array<i64: 256, 256>}, {pipeline_mode = #tpu.pipeline_mode<synchronous>, transform_indices = @transform_6, window_bounds = array<i64: 1, 256>}, {pipeline_mode = #tpu.pipeline_mode<synchronous>, transform_indices = @transform_7, window_bounds = array<i64: 256, 128>}, {pipeline_mode = #tpu.pipeline_mode<synchronous>, transform_indices = @transform_8, window_bounds = array<i64: 1, 128>}, {transform_indices = @transform_9, window_bounds = array<i64: 1, 1, 128>}]} {
    %c0 = arith.constant 0 : index
    %c0_0 = arith.constant 0 : index
    %c0_1 = arith.constant 0 : index
    %0 = vector.load %arg1[%c0, %c0_0, %c0_1] : memref<1x1x256xf32, #tpu.memory_space<vmem>>, vector<1x1x256xf32>
    %1 = vector.shape_cast %0 : vector<1x1x256xf32> to vector<1x256xf32>
    %c0_2 = arith.constant 0 : index
    %c0_3 = arith.constant 0 : index
    %2 = vector.load %arg2[%c0_2, %c0_3] : memref<256x512xf32, #tpu.memory_space<vmem>>, vector<256x512xf32>
    %c0_4 = arith.constant 0 : index
    %c0_5 = arith.constant 0 : index
    %3 = vector.load %arg3[%c0_4, %c0_5] : memref<1x512xf32, #tpu.memory_space<vmem>>, vector<1x512xf32>
    %cst = arith.constant dense<0.000000e+00> : vector<1x512xf32>
    %4 = tpu.matmul %1, %2, %cst {dimension_numbers = #tpu.dot_dimension_numbers<[1], [0], [0], [1], [0, 0, 1, 1], [], []>} : vector<1x256xf32>, vector<256x512xf32>, vector<1x512xf32> -> vector<1x512xf32>
    %5 = arith.addf %4, %3 : vector<1x512xf32>
    %cst_6 = arith.constant 0.000000e+00 : f32
    %6 = vector.broadcast %cst_6 : f32 to vector<1x512xf32>
    %7 = arith.cmpf oge, %5, %6 : vector<1x512xf32>
    %cst_7 = arith.constant 3.000000e-01 : f32
    %8 = vector.broadcast %cst_7 : f32 to vector<1x512xf32>
    %9 = arith.mulf %8, %5 : vector<1x512xf32>
    %10 = arith.select %7, %5, %9 : vector<1x512xi1>, vector<1x512xf32>
    %c0_8 = arith.constant 0 : index
    %c0_9 = arith.constant 0 : index
    %11 = vector.load %arg4[%c0_8, %c0_9] : memref<512x256xf32, #tpu.memory_space<vmem>>, vector<512x256xf32>
    %c0_10 = arith.constant 0 : index
    %c0_11 = arith.constant 0 : index
    %12 = vector.load %arg5[%c0_10, %c0_11] : memref<1x256xf32, #tpu.memory_space<vmem>>, vector<1x256xf32>
    %cst_12 = arith.constant dense<0.000000e+00> : vector<1x256xf32>
    %13 = tpu.matmul %10, %11, %cst_12 {dimension_numbers = #tpu.dot_dimension_numbers<[1], [0], [0], [1], [0, 0, 1, 1], [], []>} : vector<1x512xf32>, vector<512x256xf32>, vector<1x256xf32> -> vector<1x256xf32>
    %14 = arith.addf %13, %12 : vector<1x256xf32>
    %cst_13 = arith.constant 0.000000e+00 : f32
    %15 = vector.broadcast %cst_13 : f32 to vector<1x256xf32>
    %16 = arith.cmpf oge, %14, %15 : vector<1x256xf32>
    %cst_14 = arith.constant 3.000000e-01 : f32
    %17 = vector.broadcast %cst_14 : f32 to vector<1x256xf32>
    %18 = arith.mulf %17, %14 : vector<1x256xf32>
    %19 = arith.select %16, %14, %18 : vector<1x256xi1>, vector<1x256xf32>
    %c0_15 = arith.constant 0 : index
    %c0_16 = arith.constant 0 : index
    %20 = vector.load %arg6[%c0_15, %c0_16] : memref<256x256xf32, #tpu.memory_space<vmem>>, vector<256x256xf32>
    %c0_17 = arith.constant 0 : index
    %c0_18 = arith.constant 0 : index
    %21 = vector.load %arg7[%c0_17, %c0_18] : memref<1x256xf32, #tpu.memory_space<vmem>>, vector<1x256xf32>
    %cst_19 = arith.constant dense<0.000000e+00> : vector<1x256xf32>
    %22 = tpu.matmul %19, %20, %cst_19 {dimension_numbers = #tpu.dot_dimension_numbers<[1], [0], [0], [1], [0, 0, 1, 1], [], []>} : vector<1x256xf32>, vector<256x256xf32>, vector<1x256xf32> -> vector<1x256xf32>
    %23 = arith.addf %22, %21 : vector<1x256xf32>
    %cst_20 = arith.constant 0.000000e+00 : f32
    %24 = vector.broadcast %cst_20 : f32 to vector<1x256xf32>
    %25 = arith.cmpf oge, %23, %24 : vector<1x256xf32>
    %cst_21 = arith.constant 3.000000e-01 : f32
    %26 = vector.broadcast %cst_21 : f32 to vector<1x256xf32>
    %27 = arith.mulf %26, %23 : vector<1x256xf32>
    %28 = arith.select %25, %23, %27 : vector<1x256xi1>, vector<1x256xf32>
    %c0_22 = arith.constant 0 : index
    %c0_23 = arith.constant 0 : index
    %29 = vector.load %arg8[%c0_22, %c0_23] : memref<256x128xf32, #tpu.memory_space<vmem>>, vector<256x128xf32>
    %c0_24 = arith.constant 0 : index
    %c0_25 = arith.constant 0 : index
    %30 = vector.load %arg9[%c0_24, %c0_25] : memref<1x128xf32, #tpu.memory_space<vmem>>, vector<1x128xf32>
    %cst_26 = arith.constant dense<0.000000e+00> : vector<1x128xf32>
    %31 = tpu.matmul %28, %29, %cst_26 {dimension_numbers = #tpu.dot_dimension_numbers<[1], [0], [0], [1], [0, 0, 1, 1], [], []>} : vector<1x256xf32>, vector<256x128xf32>, vector<1x128xf32> -> vector<1x128xf32>
    %32 = arith.addf %31, %30 : vector<1x128xf32>
    %c0_27 = arith.constant 0 : index
    %c0_28 = arith.constant 0 : index
    %c0_29 = arith.constant 0 : index
    %33 = vector.load %arg10[%c0_27, %c0_28, %c0_29] : memref<1x1x128xf32, #tpu.memory_space<vmem>>, vector<1x1x128xf32>
    %34 = vector.shape_cast %33 : vector<1x1x128xf32> to vector<1x128xf32>
    %35 = vector.shape_cast %32 : vector<1x128xf32> to vector<1x1x128xf32>
    tpu.vector_store %arg10[%c0_27, %c0_28, %c0_29], %35 {strides = array<i32>} : memref<1x1x128xf32, #tpu.memory_space<vmem>>, vector<1x1x128xf32>,
    return
  }
  func.func @transform_0(%arg0: i32) -> (i32, i32, i32) {
    %c0_i32 = arith.constant 0 : i32
    %c0_i32_0 = arith.constant 0 : i32
    %c0_i32_1 = arith.constant 0 : i32
    return %arg0, %c0_i32, %c0_i32_0 : i32, i32, i32
  }
  func.func @transform_1(%arg0: i32) -> (i32, i32) {
    %c0_i32 = arith.constant 0 : i32
    %c0_i32_0 = arith.constant 0 : i32
    %c0_i32_1 = arith.constant 0 : i32
    return %c0_i32, %c0_i32_0 : i32, i32
  }
  func.func @transform_2(%arg0: i32) -> (i32, i32) {
    %c0_i32 = arith.constant 0 : i32
    %c0_i32_0 = arith.constant 0 : i32
    %c0_i32_1 = arith.constant 0 : i32
    return %c0_i32, %c0_i32_0 : i32, i32
  }
  func.func @transform_3(%arg0: i32) -> (i32, i32) {
    %c0_i32 = arith.constant 0 : i32
    %c0_i32_0 = arith.constant 0 : i32
    %c0_i32_1 = arith.constant 0 : i32
    return %c0_i32, %c0_i32_0 : i32, i32
  }
  func.func @transform_4(%arg0: i32) -> (i32, i32) {
    %c0_i32 = arith.constant 0 : i32
    %c0_i32_0 = arith.constant 0 : i32
    %c0_i32_1 = arith.constant 0 : i32
    return %c0_i32, %c0_i32_0 : i32, i32
  }
  func.func @transform_5(%arg0: i32) -> (i32, i32) {
    %c0_i32 = arith.constant 0 : i32
    %c0_i32_0 = arith.constant 0 : i32
    %c0_i32_1 = arith.constant 0 : i32
    return %c0_i32, %c0_i32_0 : i32, i32
  }
  func.func @transform_6(%arg0: i32) -> (i32, i32) {
    %c0_i32 = arith.constant 0 : i32
    %c0_i32_0 = arith.constant 0 : i32
    %c0_i32_1 = arith.constant 0 : i32
    return %c0_i32, %c0_i32_0 : i32, i32
  }
  func.func @transform_7(%arg0: i32) -> (i32, i32) {
    %c0_i32 = arith.constant 0 : i32
    %c0_i32_0 = arith.constant 0 : i32
    %c0_i32_1 = arith.constant 0 : i32
    return %c0_i32, %c0_i32_0 : i32, i32
  }
  func.func @transform_8(%arg0: i32) -> (i32, i32) {
    %c0_i32 = arith.constant 0 : i32
    %c0_i32_0 = arith.constant 0 : i32
    %c0_i32_1 = arith.constant 0 : i32
    return %c0_i32, %c0_i32_0 : i32, i32
  }
  func.func @transform_9(%arg0: i32) -> (i32, i32, i32) {
    %c0_i32 = arith.constant 0 : i32
    %c0_i32_0 = arith.constant 0 : i32
    %c0_i32_1 = arith.constant 0 : i32
    return %arg0, %c0_i32, %c0_i32_0 : i32, i32, i32
  }
}

</mosaic_0001>

<llo_original>
// kernel: tpu_custom_call.1
$region0: #{tpu_custom_call.1}
  #allocation0 [shape = 'u32[]', space=smem, size = 0x4, offset = 0x4, fixed_abs, tag = 'smem constant byte address 0x4 - core index']
  #allocation1 [shape = 'u32[144,128]{1,0:T(1,128)}', space=vmem, size = 0x12000, scoped, tag = 'internal scratch']
  %s0 = inlined_call_operand.hbm [shape: f32[2,1,256], index: 0, kind: input, shape index: {}]
  %s1 = inlined_call_operand.hbm [shape: f32[256,512], index: 1, kind: input, shape index: {}]
  %s2 = inlined_call_operand.vmem [shape: f32[1,512], index: 2, kind: input, shape index: {}]
  %s3 = inlined_call_operand.hbm [shape: f32[512,256], index: 3, kind: input, shape index: {}]
  %s4 = inlined_call_operand.vmem [shape: f32[1,256], index: 4, kind: input, shape index: {}]
  %s5 = inlined_call_operand.hbm [shape: f32[256,256], index: 5, kind: input, shape index: {}]
  %s6 = inlined_call_operand.vmem [shape: f32[1,256], index: 6, kind: input, shape index: {}]
  %s7 = inlined_call_operand.hbm [shape: f32[256,128], index: 7, kind: input, shape index: {}]
  %s8 = inlined_call_operand.vmem [shape: f32[1,128], index: 8, kind: input, shape index: {}]
  %s9 = inlined_call_operand.hbm [shape: f32[2,1,128], index: 9, kind: output, shape index: {}]
  %s10 = sld [smem:[#allocation0]]
  $region89: #{tpu_custom_call.1} parent=0
    _
  %s12 = ssub.s32 1, %s10
  %s13 = scalar_select 0, %s12, %s10
  $region1: #{tpu_custom_call.1} parent=0
    #allocation2 [shape = 'u8[2048]{0}', space=vmem, size = 0x800, scoped, tag = 'input window, operand 0']
    #allocation3 [shape = 's32[2]{0}', space=sflag, size = 0x8, scoped, tag = 'scoped memory for tpu_custom_call.1']
    #allocation4 [shape = 's32[2]{0}', space=sflag, size = 0x8, scoped, tag = 'scoped memory for tpu_custom_call.1']
    #allocation5 [shape = 'u8[524288]{0}', space=vmem, size = 0x80000, scoped, tag = 'input window, operand 1, single buffered']
    #allocation6 [shape = 's32[1]{0}', space=sflag, size = 0x4, scoped, tag = 'scoped memory for tpu_custom_call.1']
    #allocation7 [shape = 'u8[524288]{0}', space=vmem, size = 0x80000, scoped, tag = 'input window, operand 3, single buffered']
    #allocation8 [shape = 'u8[262144]{0}', space=vmem, size = 0x40000, scoped, tag = 'input window, operand 5, single buffered']
    #allocation9 [shape = 's32[1]{0}', space=sflag, size = 0x4, scoped, tag = 'scoped memory for tpu_custom_call.1']
    #allocation10 [shape = 'u8[131072]{0}', space=vmem, size = 0x20000, scoped, tag = 'input window, operand 7, single buffered']
    #allocation11 [shape = 'u8[1024]{0}', space=vmem, size = 0x400, scoped, tag = 'output window, operand 0']
    %14 = vsyncpa [#allocation3], 0
    %s15 = scalar_lea.sflag [#allocation3], 1
    %16 = vsyncpa %s15, 0
    %17 = vsyncpa [#allocation6], 0
    %18 = vsyncpa [#allocation9], 0
    %19 = vsyncpa [#allocation4], 0
    %s20 = scalar_lea.sflag [#allocation4], 1
    %21 = vsyncpa %s20, 0
    loop: start=0, step=1, limit=4
    $region2: #{tpu_custom_call.1} parent=1 // loop_pre_header
      _
    $region3: #{tpu_custom_call.1} parent=1 // loop_header
      %s23 = sphi 0, %s27
      %p24 = scmp.ge.s32.totalorder %s23, 4
      %s33 = sphi 0, %s35
      %s36 = sphi 0, %s33
      %s37 = sphi 0, %s36
      %s53 = sphi 0, %s37
      %s57 = sphi 0, %s57
      %s59 = sphi 0, %s57
      %s60 = sphi 0, %s59
      %s74 = sphi 0, %s60
      %s78 = sphi 0, %s78
      %s80 = sphi 0, %s78
      %s81 = sphi 0, %s80
      %s95 = sphi 0, %s81
      %s99 = sphi 0, %s99
      %s101 = sphi 0, %s99
      %s102 = sphi 0, %s101
      %s116 = sphi 0, %s102
      %s120 = sphi 0, %s120
      %s122 = sphi 0, %s120
      %s123 = sphi 0, %s122
      %s137 = sphi 0, %s123
      %s141 = sphi 0, %s141
      %s143 = sphi 0, %s141
      %s144 = sphi 0, %s143
      %s158 = sphi 0, %s144
      %s162 = sphi 0, %s162
      %s164 = sphi 0, %s162
      %s165 = sphi 0, %s164
      %s179 = sphi 0, %s165
      %s183 = sphi 0, %s183
      %s185 = sphi 0, %s183
      %s186 = sphi 0, %s185
      %s200 = sphi 0, %s186
      %s204 = sphi 0, %s204
      %s206 = sphi 0, %s204
      %s207 = sphi 0, %s206
      %s221 = sphi 0, %s207
      %s227 = sphi 0, %s229
      %s230 = sphi 0, %s227
      %s231 = sphi 0, %s230
      %s247 = sphi 0, %s231
    $region4: #{tpu_custom_call.1} parent=1 // loop_header_branch
      %26 = sbr.rel (%p24) target = $region8
    $region5: #{tpu_custom_call.1} parent=1 // loop_body
      %s28 = ssub.s32 %s23, 1
      %s29 = ssub.s32 %s23, 2
      %s30 = sadd.s32 %s23, 1
      %s31 = ssub.s32 %s23, %s30
      %p32 = scmp.eq.s32.totalorder %s31, 0
      %s34 = sadd.s32 %s33, 1
      %s35 = scalar_select %p32, %s33, %s34
      %p38 = pneg %p32
      %p39 = scmp.eq.s32.totalorder %s23, 1
      %p40 = por %p38, %p39
      %p41 = scmp.ne.s32.totalorder %s33, %s36
      %p42 = scmp.eq.s32.totalorder %s23, 0
      %p43 = por %p41, %p42
      %p44 = scmp.ne.s32.totalorder %s33, %s36
      %p45 = scmp.eq.s32.totalorder %s28, 1
      %p46 = por %p44, %p45
      %p47 = scmp.ne.s32.totalorder %s36, %s37
      %p48 = scmp.eq.s32.totalorder %s28, 0
      %p49 = por %p47, %p48
      %p50 = scmp.ne.s32.totalorder %s36, %s37
      %p51 = scmp.eq.s32.totalorder %s29, 1
      %p52 = por %p50, %p51
      %p54 = scmp.ne.s32.totalorder %s37, %s53
      %p55 = scmp.eq.s32.totalorder %s29, 0
      %p56 = por %p54, %p55
      %s58 = sadd.s32 %s57, 1
      %p61 = scmp.eq.s32.totalorder %s23, 1
      %p62 = scmp.ne.s32.totalorder %s57, %s59
      %p63 = scmp.eq.s32.totalorder %s23, 0
      %p64 = por %p62, %p63
      %p65 = scmp.ne.s32.totalorder %s57, %s59
      %p66 = scmp.eq.s32.totalorder %s28, 1
      %p67 = por %p65, %p66
      %p68 = scmp.ne.s32.totalorder %s59, %s60
      %p69 = scmp.eq.s32.totalorder %s28, 0
      %p70 = por %p68, %p69
      %p71 = scmp.ne.s32.totalorder %s59, %s60
      %p72 = scmp.eq.s32.totalorder %s29, 1
      %p73 = por %p71, %p72
      %p75 = scmp.ne.s32.totalorder %s60, %s74
      %p76 = scmp.eq.s32.totalorder %s29, 0
      %p77 = por %p75, %p76
      %s79 = sadd.s32 %s78, 1
      %p82 = scmp.eq.s32.totalorder %s23, 1
      %p83 = scmp.ne.s32.totalorder %s78, %s80
      %p84 = scmp.eq.s32.totalorder %s23, 0
      %p85 = por %p83, %p84
      %p86 = scmp.ne.s32.totalorder %s78, %s80
      %p87 = scmp.eq.s32.totalorder %s28, 1
      %p88 = por %p86, %p87
      %p89 = scmp.ne.s32.totalorder %s80, %s81
      %p90 = scmp.eq.s32.totalorder %s28, 0
      %p91 = por %p89, %p90
      %p92 = scmp.ne.s32.totalorder %s80, %s81
      %p93 = scmp.eq.s32.totalorder %s29, 1
      %p94 = por %p92, %p93
      %p96 = scmp.ne.s32.totalorder %s81, %s95
      %p97 = scmp.eq.s32.totalorder %s29, 0
      %p98 = por %p96, %p97
      %s100 = sadd.s32 %s99, 1
      %p103 = scmp.eq.s32.totalorder %s23, 1
      %p104 = scmp.ne.s32.totalorder %s99, %s101
      %p105 = scmp.eq.s32.totalorder %s23, 0
      %p106 = por %p104, %p105
      %p107 = scmp.ne.s32.totalorder %s99, %s101
      %p108 = scmp.eq.s32.totalorder %s28, 1
      %p109 = por %p107, %p108
      %p110 = scmp.ne.s32.totalorder %s101, %s102
      %p111 = scmp.eq.s32.totalorder %s28, 0
      %p112 = por %p110, %p111
      %p113 = scmp.ne.s32.totalorder %s101, %s102
      %p114 = scmp.eq.s32.totalorder %s29, 1
      %p115 = por %p113, %p114
      %p117 = scmp.ne.s32.totalorder %s102, %s116
      %p118 = scmp.eq.s32.totalorder %s29, 0
      %p119 = por %p117, %p118
      %s121 = sadd.s32 %s120, 1
      %p124 = scmp.eq.s32.totalorder %s23, 1
      %p125 = scmp.ne.s32.totalorder %s120, %s122
      %p126 = scmp.eq.s32.totalorder %s23, 0
      %p127 = por %p125, %p126
      %p128 = scmp.ne.s32.totalorder %s120, %s122
      %p129 = scmp.eq.s32.totalorder %s28, 1
      %p130 = por %p128, %p129
      %p131 = scmp.ne.s32.totalorder %s122, %s123
      %p132 = scmp.eq.s32.totalorder %s28, 0
      %p133 = por %p131, %p132
      %p134 = scmp.ne.s32.totalorder %s122, %s123
      %p135 = scmp.eq.s32.totalorder %s29, 1
      %p136 = por %p134, %p135
      %p138 = scmp.ne.s32.totalorder %s123, %s137
      %p139 = scmp.eq.s32.totalorder %s29, 0
      %p140 = por %p138, %p139
      %s142 = sadd.s32 %s141, 1
      %p145 = scmp.eq.s32.totalorder %s23, 1
      %p146 = scmp.ne.s32.totalorder %s141, %s143
      %p147 = scmp.eq.s32.totalorder %s23, 0
      %p148 = por %p146, %p147
      %p149 = scmp.ne.s32.totalorder %s141, %s143
      %p150 = scmp.eq.s32.totalorder %s28, 1
      %p151 = por %p149, %p150
      %p152 = scmp.ne.s32.totalorder %s143, %s144
      %p153 = scmp.eq.s32.totalorder %s28, 0
      %p154 = por %p152, %p153
      %p155 = scmp.ne.s32.totalorder %s143, %s144
      %p156 = scmp.eq.s32.totalorder %s29, 1
      %p157 = por %p155, %p156
      %p159 = scmp.ne.s32.totalorder %s144, %s158
      %p160 = scmp.eq.s32.totalorder %s29, 0
      %p161 = por %p159, %p160
      %s163 = sadd.s32 %s162, 1
      %p166 = scmp.eq.s32.totalorder %s23, 1
      %p167 = scmp.ne.s32.totalorder %s162, %s164
      %p168 = scmp.eq.s32.totalorder %s23, 0
      %p169 = por %p167, %p168
      %p170 = scmp.ne.s32.totalorder %s162, %s164
      %p171 = scmp.eq.s32.totalorder %s28, 1
      %p172 = por %p170, %p171
      %p173 = scmp.ne.s32.totalorder %s164, %s165
      %p174 = scmp.eq.s32.totalorder %s28, 0
      %p175 = por %p173, %p174
      %p176 = scmp.ne.s32.totalorder %s164, %s165
      %p177 = scmp.eq.s32.totalorder %s29, 1
      %p178 = por %p176, %p177
      %p180 = scmp.ne.s32.totalorder %s165, %s179
      %p181 = scmp.eq.s32.totalorder %s29, 0
      %p182 = por %p180, %p181
      %s184 = sadd.s32 %s183, 1
      %p187 = scmp.eq.s32.totalorder %s23, 1
      %p188 = scmp.ne.s32.totalorder %s183, %s185
      %p189 = scmp.eq.s32.totalorder %s23, 0
      %p190 = por %p188, %p189
      %p191 = scmp.ne.s32.totalorder %s183, %s185
      %p192 = scmp.eq.s32.totalorder %s28, 1
      %p193 = por %p191, %p192
      %p194 = scmp.ne.s32.totalorder %s185, %s186
      %p195 = scmp.eq.s32.totalorder %s28, 0
      %p196 = por %p194, %p195
      %p197 = scmp.ne.s32.totalorder %s185, %s186
      %p198 = scmp.eq.s32.totalorder %s29, 1
      %p199 = por %p197, %p198
      %p201 = scmp.ne.s32.totalorder %s186, %s200
      %p202 = scmp.eq.s32.totalorder %s29, 0
      %p203 = por %p201, %p202
      %s205 = sadd.s32 %s204, 1
      %p208 = scmp.eq.s32.totalorder %s23, 1
      %p209 = scmp.ne.s32.totalorder %s204, %s206
      %p210 = scmp.eq.s32.totalorder %s23, 0
      %p211 = por %p209, %p210
      %p212 = scmp.ne.s32.totalorder %s204, %s206
      %p213 = scmp.eq.s32.totalorder %s28, 1
      %p214 = por %p212, %p213
      %p215 = scmp.ne.s32.totalorder %s206, %s207
      %p216 = scmp.eq.s32.totalorder %s28, 0
      %p217 = por %p215, %p216
      %p218 = scmp.ne.s32.totalorder %s206, %s207
      %p219 = scmp.eq.s32.totalorder %s29, 1
      %p220 = por %p218, %p219
      %p222 = scmp.ne.s32.totalorder %s207, %s221
      %p223 = scmp.eq.s32.totalorder %s29, 0
      %p224 = por %p222, %p223
      %s225 = ssub.s32 %s23, %s30
      %p226 = scmp.eq.s32.totalorder %s225, 0
      %s228 = sadd.s32 %s227, 1
      %s229 = scalar_select %p226, %s227, %s228
      %p232 = pneg %p226
      %p233 = scmp.eq.s32.totalorder %s23, 1
      %p234 = por %p232, %p233
      %p235 = scmp.ne.s32.totalorder %s227, %s230
      %p236 = scmp.eq.s32.totalorder %s23, 0
      %p237 = por %p235, %p236
      %p238 = scmp.ne.s32.totalorder %s227, %s230
      %p239 = scmp.eq.s32.totalorder %s28, 1
      %p240 = por %p238, %p239
      %p241 = scmp.ne.s32.totalorder %s230, %s231
      %p242 = scmp.eq.s32.totalorder %s28, 0
      %p243 = por %p241, %p242
      %p244 = scmp.ne.s32.totalorder %s230, %s231
      %p245 = scmp.eq.s32.totalorder %s29, 1
      %p246 = por %p244, %p245
      %p248 = scmp.ne.s32.totalorder %s231, %s247
      %p249 = scmp.eq.s32.totalorder %s29, 0
      %p250 = por %p248, %p249
      %p251 = scmp.le.s32.totalorder 1, %s23
      %p252 = scmp.lt.s32.totalorder %s23, 3
      %p253 = pnand %p251, %p252
      %p254 = pneg %p253
      // Predicated region
      $region9: #{tpu_custom_call.1} parent=5 // pred_check
        _
      $region10: #{tpu_custom_call.1} parent=5 // pred_check_branch
        %256 = sbr.rel (%p253) target = $region12
      $region11: #{tpu_custom_call.1} parent=5 // pred_region
        %s257 = ssub.s32 %s23, 1
        // Predicated region
        $region13: #{tpu_custom_call.1} parent=11 // pred_check
          %p258 = pneg %p70
        $region14: #{tpu_custom_call.1} parent=11 // pred_check_branch
          %260 = sbr.rel (%p258) target = $region16
        $region15: #{tpu_custom_call.1} parent=11 // pred_region
          %s262 = ssub.s32 16384, 16384
          %263 = vsyncadd [#allocation6], %s262
          %s264 = sshll.u32 [#allocation5], 4
          %s265 = int_to_ptr.vmem [resolvable:$true] %s264
          %270 = dma.hbm_to_vmem [thread:$0]  %s1, 16384, %s265, [#allocation6], 512, 512, 32
        $region16: #{tpu_custom_call.1} parent=11 // pred_fallthru
          _
        // Predicated region
        $region17: #{tpu_custom_call.1} parent=11 // pred_check
          %p271 = pneg %p91
        $region18: #{tpu_custom_call.1} parent=11 // pred_check_branch
          %273 = sbr.rel (%p271) target = $region20
        $region19: #{tpu_custom_call.1} parent=11 // pred_region
          _
        $region20: #{tpu_custom_call.1} parent=11 // pred_fallthru
          _
        // Predicated region
        $region21: #{tpu_custom_call.1} parent=11 // pred_check
          %p274 = pneg %p112
        $region22: #{tpu_custom_call.1} parent=11 // pred_check_branch
          %276 = sbr.rel (%p274) target = $region24
        $region23: #{tpu_custom_call.1} parent=11 // pred_region
          %s278 = ssub.s32 16384, 16384
          %279 = vsyncadd [#allocation6], %s278
          %s280 = sshll.u32 [#allocation7], 4
          %s281 = int_to_ptr.vmem [resolvable:$true] %s280
          %286 = dma.hbm_to_vmem [thread:$0]  %s3, 16384, %s281, [#allocation6], 256, 256, 16
        $region24: #{tpu_custom_call.1} parent=11 // pred_fallthru
          _
        // Predicated region
        $region25: #{tpu_custom_call.1} parent=11 // pred_check
          %p287 = pneg %p133
        $region26: #{tpu_custom_call.1} parent=11 // pred_check_branch
          %289 = sbr.rel (%p287) target = $region28
        $region27: #{tpu_custom_call.1} parent=11 // pred_region
          _
        $region28: #{tpu_custom_call.1} parent=11 // pred_fallthru
          _
        // Predicated region
        $region29: #{tpu_custom_call.1} parent=11 // pred_check
          %p290 = pneg %p154
        $region30: #{tpu_custom_call.1} parent=11 // pred_check_branch
          %292 = sbr.rel (%p290) target = $region32
        $region31: #{tpu_custom_call.1} parent=11 // pred_region
          %s294 = ssub.s32 8192, 8192
          %295 = vsyncadd [#allocation9], %s294
          %s296 = sshll.u32 [#allocation8], 4
          %s297 = int_to_ptr.vmem [resolvable:$true] %s296
          %302 = dma.hbm_to_vmem [thread:$0]  %s5, 8192, %s297, [#allocation9], 256, 256, 16
        $region32: #{tpu_custom_call.1} parent=11 // pred_fallthru
          _
        // Predicated region
        $region33: #{tpu_custom_call.1} parent=11 // pred_check
          %p303 = pneg %p175
        $region34: #{tpu_custom_call.1} parent=11 // pred_check_branch
          %305 = sbr.rel (%p303) target = $region36
        $region35: #{tpu_custom_call.1} parent=11 // pred_region
          _
        $region36: #{tpu_custom_call.1} parent=11 // pred_fallthru
          _
        // Predicated region
        $region37: #{tpu_custom_call.1} parent=11 // pred_check
          %p306 = pneg %p196
        $region38: #{tpu_custom_call.1} parent=11 // pred_check_branch
          %308 = sbr.rel (%p306) target = $region40
        $region39: #{tpu_custom_call.1} parent=11 // pred_region
          %s310 = ssub.s32 4096, 4096
          %311 = vsyncadd [#allocation9], %s310
          %s312 = sshll.u32 [#allocation10], 4
          %s313 = int_to_ptr.vmem [resolvable:$true] %s312
          %318 = dma.hbm_to_vmem [thread:$0]  %s7, 4096, %s313, [#allocation9], 128, 128, 8
        $region40: #{tpu_custom_call.1} parent=11 // pred_fallthru
          _
        // Predicated region
        $region41: #{tpu_custom_call.1} parent=11 // pred_check
          %p319 = pneg %p217
        $region42: #{tpu_custom_call.1} parent=11 // pred_check_branch
          %321 = sbr.rel (%p319) target = $region44
        $region43: #{tpu_custom_call.1} parent=11 // pred_region
          _
        $region44: #{tpu_custom_call.1} parent=11 // pred_fallthru
          _
      $region12: #{tpu_custom_call.1} parent=5 // pred_fallthru
        _
      %p322 = scmp.lt.s32.totalorder %s23, 2
      // Predicated region
      $region45: #{tpu_custom_call.1} parent=5 // pred_check
        %p323 = pneg %p322
      $region46: #{tpu_custom_call.1} parent=5 // pred_check_branch
        %325 = sbr.rel (%p323) target = $region48
      $region47: #{tpu_custom_call.1} parent=5 // pred_region
        // Predicated region
        $region49: #{tpu_custom_call.1} parent=47 // pred_check
          %p326 = pneg %p43
        $region50: #{tpu_custom_call.1} parent=47 // pred_check_branch
          %328 = sbr.rel (%p326) target = $region52
        $region51: #{tpu_custom_call.1} parent=47 // pred_region
          %s329 = sand.u32 %s33, 1
          %s330 = scalar_lea.sflag [#allocation3], %s329
          %s331 = sand.u32 %s33, 1
          %s332 = smul.addr %s331, 2
          %s333 = scalar_lea.vmem [#allocation2], %s332
          %s335 = ssub.s32 32, 32
          %336 = vsyncadd %s330, %s335
          %s337 = smul.addr %s23, 2
          %s338 = smul.addr %s337, 16
          %s339 = scalar_lea.hbm %s0, %s338
          %s341 = sshll.u32 %s333, 4
          %s342 = int_to_ptr.vmem [resolvable:$true] %s341
          %344 = dma.hbm_to_vmem [thread:$0]  %s339, 32, %s342, %s330
        $region52: #{tpu_custom_call.1} parent=47 // pred_fallthru
          _
      $region48: #{tpu_custom_call.1} parent=5 // pred_fallthru
        _
      %p345 = scmp.le.s32.totalorder 1, %s23
      %p346 = scmp.lt.s32.totalorder %s23, 3
      %p347 = pnand %p345, %p346
      %p348 = pneg %p347
      // Predicated region
      $region53: #{tpu_custom_call.1} parent=5 // pred_check
        _
      $region54: #{tpu_custom_call.1} parent=5 // pred_check_branch
        %350 = sbr.rel (%p347) target = $region56
      $region55: #{tpu_custom_call.1} parent=5 // pred_region
        %s351 = ssub.s32 %s23, 1
        %s352 = sand.u32 %s36, 1
        %s353 = scalar_lea.sflag [#allocation3], %s352
        %s354 = sand.u32 %s36, 1
        %s355 = smul.addr %s354, 2
        %s356 = scalar_lea.vmem [#allocation2], %s355
        // Predicated region
        $region57: #{tpu_custom_call.1} parent=55 // pred_check
          %p357 = pneg %p49
        $region58: #{tpu_custom_call.1} parent=55 // pred_check_branch
          %359 = sbr.rel (%p357) target = $region60
        $region59: #{tpu_custom_call.1} parent=55 // pred_region
          %360 = dma.done %s353, 32
        $region60: #{tpu_custom_call.1} parent=55 // pred_fallthru
          _
        // Predicated region
        $region61: #{tpu_custom_call.1} parent=55 // pred_check
          %p361 = pneg %p70
        $region62: #{tpu_custom_call.1} parent=55 // pred_check_branch
          %363 = sbr.rel (%p361) target = $region64
        $region63: #{tpu_custom_call.1} parent=55 // pred_region
          %364 = dma.done [#allocation6], 16384
        $region64: #{tpu_custom_call.1} parent=55 // pred_fallthru
          _
        // Predicated region
        $region65: #{tpu_custom_call.1} parent=55 // pred_check
          %p365 = pneg %p112
        $region66: #{tpu_custom_call.1} parent=55 // pred_check_branch
          %367 = sbr.rel (%p365) target = $region68
        $region67: #{tpu_custom_call.1} parent=55 // pred_region
          %368 = dma.done [#allocation6], 16384
        $region68: #{tpu_custom_call.1} parent=55 // pred_fallthru
          _
        // Predicated region
        $region69: #{tpu_custom_call.1} parent=55 // pred_check
          %p369 = pneg %p154
        $region70: #{tpu_custom_call.1} parent=55 // pred_check_branch
          %371 = sbr.rel (%p369) target = $region72
        $region71: #{tpu_custom_call.1} parent=55 // pred_region
          %372 = dma.done [#allocation9], 8192
        $region72: #{tpu_custom_call.1} parent=55 // pred_fallthru
          _
        // Predicated region
        $region73: #{tpu_custom_call.1} parent=55 // pred_check
          %p373 = pneg %p196
        $region74: #{tpu_custom_call.1} parent=55 // pred_check_branch
          %375 = sbr.rel (%p373) target = $region76
        $region75: #{tpu_custom_call.1} parent=55 // pred_region
          %376 = dma.done [#allocation9], 4096
        $region76: #{tpu_custom_call.1} parent=55 // pred_fallthru
          _
        %s377 = sand.u32 %s36, 1
        %s378 = scalar_lea.sflag [#allocation3], %s377
        %s379 = sand.u32 %s36, 1
        %s380 = smul.addr %s379, 2
        %s381 = scalar_lea.vmem [#allocation2], %s380
        %p382 = pneg %p49
        %p383 = pneg %p46
        %p384 = pneg %p70
        %p385 = pneg %p67
        %p386 = pneg %p91
        %p387 = pneg %p88
        %p388 = pneg %p112
        %p389 = pneg %p109
        %p390 = pneg %p133
        %p391 = pneg %p130
        %p392 = pneg %p154
        %p393 = pneg %p151
        %p394 = pneg %p175
        %p395 = pneg %p172
        %p396 = pneg %p196
        %p397 = pneg %p193
        %p398 = pneg %p217
        %p399 = pneg %p214
        %p400 = pneg %p243
        %p401 = pneg %p240
        %s402 = sand.u32 %s230, 1
        %s403 = scalar_lea.sflag [#allocation4], %s402
        %s404 = sand.u32 %s230, 1
        %s405 = scalar_lea.vmem [#allocation11], %s404
        %v406 = vld [vmem:[%s356] sm:$0x3]
        %v407 = vld [vmem:[#allocation5] sm:$0xff]
        %v408 = vld [vmem:[#allocation5 + $0x8] sm:$0xff]
        %v409 = vld [vmem:[#allocation5 + $0x10] sm:$0xff]
        %v410 = vld [vmem:[#allocation5 + $0x18] sm:$0xff]
        %v411 = vld [vmem:[#allocation5 + $0x20] sm:$0xff]
        %v412 = vld [vmem:[#allocation5 + $0x28] sm:$0xff]
        %v413 = vld [vmem:[#allocation5 + $0x30] sm:$0xff]
        %v414 = vld [vmem:[#allocation5 + $0x38] sm:$0xff]
        %v415 = vld [vmem:[#allocation5 + $0x40] sm:$0xff]
        %v416 = vld [vmem:[#allocation5 + $0x48] sm:$0xff]
        %v417 = vld [vmem:[#allocation5 + $0x50] sm:$0xff]
        %v418 = vld [vmem:[#allocation5 + $0x58] sm:$0xff]
        %v419 = vld [vmem:[#allocation5 + $0x60] sm:$0xff]
        %v420 = vld [vmem:[#allocation5 + $0x68] sm:$0xff]
        %v421 = vld [vmem:[#allocation5 + $0x70] sm:$0xff]
        %v422 = vld [vmem:[#allocation5 + $0x78] sm:$0xff]
        %v423 = vld [vmem:[#allocation5 + $0x80] sm:$0xff]
        %v424 = vld [vmem:[#allocation5 + $0x88] sm:$0xff]
        %v425 = vld [vmem:[#allocation5 + $0x90] sm:$0xff]
        %v426 = vld [vmem:[#allocation5 + $0x98] sm:$0xff]
        %v427 = vld [vmem:[#allocation5 + $0xa0] sm:$0xff]
        %v428 = vld [vmem:[#allocation5 + $0xa8] sm:$0xff]
        %v429 = vld [vmem:[#allocation5 + $0xb0] sm:$0xff]
        %v430 = vld [vmem:[#allocation5 + $0xb8] sm:$0xff]
        %v431 = vld [vmem:[#allocation5 + $0xc0] sm:$0xff]
        %v432 = vld [vmem:[#allocation5 + $0xc8] sm:$0xff]
        %v433 = vld [vmem:[#allocation5 + $0xd0] sm:$0xff]
        %v434 = vld [vmem:[#allocation5 + $0xd8] sm:$0xff]
        %v435 = vld [vmem:[#allocation5 + $0xe0] sm:$0xff]
        %v436 = vld [vmem:[#allocation5 + $0xe8] sm:$0xff]
        %v437 = vld [vmem:[#allocation5 + $0xf0] sm:$0xff]
        %v438 = vld [vmem:[#allocation5 + $0xf8] sm:$0xff]
        %v439 = vld [vmem:[#allocation5 + $0x100] sm:$0xff]
        %v440 = vld [vmem:[#allocation5 + $0x108] sm:$0xff]
        %v441 = vld [vmem:[#allocation5 + $0x110] sm:$0xff]
        %v442 = vld [vmem:[#allocation5 + $0x118] sm:$0xff]
        %v443 = vld [vmem:[#allocation5 + $0x120] sm:$0xff]
        %v444 = vld [vmem:[#allocation5 + $0x128] sm:$0xff]
        %v445 = vld [vmem:[#allocation5 + $0x130] sm:$0xff]
        %v446 = vld [vmem:[#allocation5 + $0x138] sm:$0xff]
        %v447 = vld [vmem:[#allocation5 + $0x140] sm:$0xff]
        %v448 = vld [vmem:[#allocation5 + $0x148] sm:$0xff]
        %v449 = vld [vmem:[#allocation5 + $0x150] sm:$0xff]
        %v450 = vld [vmem:[#allocation5 + $0x158] sm:$0xff]
        %v451 = vld [vmem:[#allocation5 + $0x160] sm:$0xff]
        %v452 = vld [vmem:[#allocation5 + $0x168] sm:$0xff]
        %v453 = vld [vmem:[#allocation5 + $0x170] sm:$0xff]
        %v454 = vld [vmem:[#allocation5 + $0x178] sm:$0xff]
        %v455 = vld [vmem:[#allocation5 + $0x180] sm:$0xff]
        %v456 = vld [vmem:[#allocation5 + $0x188] sm:$0xff]
        %v457 = vld [vmem:[#allocation5 + $0x190] sm:$0xff]
        %v458 = vld [vmem:[#allocation5 + $0x198] sm:$0xff]
        %v459 = vld [vmem:[#allocation5 + $0x1a0] sm:$0xff]
        %v460 = vld [vmem:[#allocation5 + $0x1a8] sm:$0xff]
        %v461 = vld [vmem:[#allocation5 + $0x1b0] sm:$0xff]
        %v462 = vld [vmem:[#allocation5 + $0x1b8] sm:$0xff]
        %v463 = vld [vmem:[#allocation5 + $0x1c0] sm:$0xff]
        %v464 = vld [vmem:[#allocation5 + $0x1c8] sm:$0xff]
        %v465 = vld [vmem:[#allocation5 + $0x1d0] sm:$0xff]
        %v466 = vld [vmem:[#allocation5 + $0x1d8] sm:$0xff]
        %v467 = vld [vmem:[#allocation5 + $0x1e0] sm:$0xff]
        %v468 = vld [vmem:[#allocation5 + $0x1e8] sm:$0xff]
        %v469 = vld [vmem:[#allocation5 + $0x1f0] sm:$0xff]
        %v470 = vld [vmem:[#allocation5 + $0x1f8] sm:$0xff]
        %v471 = vld [vmem:[#allocation5 + $0x200] sm:$0xff]
        %v472 = vld [vmem:[#allocation5 + $0x208] sm:$0xff]
        %v473 = vld [vmem:[#allocation5 + $0x210] sm:$0xff]
        %v474 = vld [vmem:[#allocation5 + $0x218] sm:$0xff]
        %v475 = vld [vmem:[#allocation5 + $0x220] sm:$0xff]
        %v476 = vld [vmem:[#allocation5 + $0x228] sm:$0xff]
        %v477 = vld [vmem:[#allocation5 + $0x230] sm:$0xff]
        %v478 = vld [vmem:[#allocation5 + $0x238] sm:$0xff]
        %v479 = vld [vmem:[#allocation5 + $0x240] sm:$0xff]
        %v480 = vld [vmem:[#allocation5 + $0x248] sm:$0xff]
        %v481 = vld [vmem:[#allocation5 + $0x250] sm:$0xff]
        %v482 = vld [vmem:[#allocation5 + $0x258] sm:$0xff]
        %v483 = vld [vmem:[#allocation5 + $0x260] sm:$0xff]
        %v484 = vld [vmem:[#allocation5 + $0x268] sm:$0xff]
        %v485 = vld [vmem:[#allocation5 + $0x270] sm:$0xff]
        %v486 = vld [vmem:[#allocation5 + $0x278] sm:$0xff]
        %v487 = vld [vmem:[#allocation5 + $0x280] sm:$0xff]
        %v488 = vld [vmem:[#allocation5 + $0x288] sm:$0xff]
        %v489 = vld [vmem:[#allocation5 + $0x290] sm:$0xff]
        %v490 = vld [vmem:[#allocation5 + $0x298] sm:$0xff]
        %v491 = vld [vmem:[#allocation5 + $0x2a0] sm:$0xff]
        %v492 = vld [vmem:[#allocation5 + $0x2a8] sm:$0xff]
        %v493 = vld [vmem:[#allocation5 + $0x2b0] sm:$0xff]
        %v494 = vld [vmem:[#allocation5 + $0x2b8] sm:$0xff]
        %v495 = vld [vmem:[#allocation5 + $0x2c0] sm:$0xff]
        %v496 = vld [vmem:[#allocation5 + $0x2c8] sm:$0xff]
        %v497 = vld [vmem:[#allocation5 + $0x2d0] sm:$0xff]
        %v498 = vld [vmem:[#allocation5 + $0x2d8] sm:$0xff]
        %v499 = vld [vmem:[#allocation5 + $0x2e0] sm:$0xff]
        %v500 = vld [vmem:[#allocation5 + $0x2e8] sm:$0xff]
        %v501 = vld [vmem:[#allocation5 + $0x2f0] sm:$0xff]
        %v502 = vld [vmem:[#allocation5 + $0x2f8] sm:$0xff]
        %v503 = vld [vmem:[#allocation5 + $0x300] sm:$0xff]
        %v504 = vld [vmem:[#allocation5 + $0x308] sm:$0xff]
        %v505 = vld [vmem:[#allocation5 + $0x310] sm:$0xff]
        %v506 = vld [vmem:[#allocation5 + $0x318] sm:$0xff]
        %v507 = vld [vmem:[#allocation5 + $0x320] sm:$0xff]
        %v508 = vld [vmem:[#allocation5 + $0x328] sm:$0xff]
        %v509 = vld [vmem:[#allocation5 + $0x330] sm:$0xff]
        %v510 = vld [vmem:[#allocation5 + $0x338] sm:$0xff]
        %v511 = vld [vmem:[#allocation5 + $0x340] sm:$0xff]
        %v512 = vld [vmem:[#allocation5 + $0x348] sm:$0xff]
        %v513 = vld [vmem:[#allocation5 + $0x350] sm:$0xff]
        %v514 = vld [vmem:[#allocation5 + $0x358] sm:$0xff]
        %v515 = vld [vmem:[#allocation5 + $0x360] sm:$0xff]
        %v516 = vld [vmem:[#allocation5 + $0x368] sm:$0xff]
        %v517 = vld [vmem:[#allocation5 + $0x370] sm:$0xff]
        %v518 = vld [vmem:[#allocation5 + $0x378] sm:$0xff]
        %v519 = vld [vmem:[#allocation5 + $0x380] sm:$0xff]
        %v520 = vld [vmem:[#allocation5 + $0x388] sm:$0xff]
        %v521 = vld [vmem:[#allocation5 + $0x390] sm:$0xff]
        %v522 = vld [vmem:[#allocation5 + $0x398] sm:$0xff]
        %v523 = vld [vmem:[#allocation5 + $0x3a0] sm:$0xff]
        %v524 = vld [vmem:[#allocation5 + $0x3a8] sm:$0xff]
        %v525 = vld [vmem:[#allocation5 + $0x3b0] sm:$0xff]
        %v526 = vld [vmem:[#allocation5 + $0x3b8] sm:$0xff]
        %v527 = vld [vmem:[#allocation5 + $0x3c0] sm:$0xff]
        %v528 = vld [vmem:[#allocation5 + $0x3c8] sm:$0xff]
        %v529 = vld [vmem:[#allocation5 + $0x3d0] sm:$0xff]
        %v530 = vld [vmem:[#allocation5 + $0x3d8] sm:$0xff]
        %v531 = vld [vmem:[#allocation5 + $0x3e0] sm:$0xff]
        %v532 = vld [vmem:[#allocation5 + $0x3e8] sm:$0xff]
        %v533 = vld [vmem:[#allocation5 + $0x3f0] sm:$0xff]
        %v534 = vld [vmem:[#allocation5 + $0x3f8] sm:$0xff]
        %v535 = vld [vmem:[%s2] sm:$0xf]
        %v537 = vlaneseq
        %v538 = vshrl.u32 %v537, 7
        %v539 = vsub.s32 0, %v538
        %v540 = vrot.slane %v406, %v539
        %v541 = vlaneseq
        %v542 = vshrl.u32 %v541, 7
        %v543 = vsub.s32 1, %v542
        %v544 = vrot.slane %v406, %v543
        %v548 = vlaneseq
        %v549 = vshrl.u32 %v548, 7
        %v550 = vsub.s32 0, %v549
        %v551 = vrot.slane %v535, %v550
        %v552 = vlaneseq
        %v553 = vshrl.u32 %v552, 7
        %v554 = vsub.s32 1, %v553
        %v555 = vrot.slane %v535, %v554
        %v556 = vlaneseq
        %v557 = vshrl.u32 %v556, 7
        %v558 = vsub.s32 2, %v557
        %v559 = vrot.slane %v535, %v558
        %v560 = vlaneseq
        %v561 = vshrl.u32 %v560, 7
        %v562 = vsub.s32 3, %v561
        %v563 = vrot.slane %v535, %v562
        %568 = vmatprep.subr.mxu0 %v408
        %569 = vmatpush1.msra.mxu0 %v407
        %570 = vmatprep.subr.mxu0 %v412
        %571 = vmatpush1.msra.mxu0 %v411
        %572 = vmatprep.subr.mxu0 %v416
        %573 = vmatpush1.msra.mxu0 %v415
        %574 = vmatprep.subr.mxu0 %v420
        %575 = vmatpush1.msra.mxu0 %v419
        %576 = vmatprep.subr.mxu0 %v424
        %577 = vmatpush1.msra.mxu0 %v423
        %578 = vmatprep.subr.mxu0 %v428
        %579 = vmatpush1.msra.mxu0 %v427
        %580 = vmatprep.subr.mxu0 %v432
        %581 = vmatpush1.msra.mxu0 %v431
        %582 = vmatprep.subr.mxu0 %v436
        %583 = vmatpush1.msra.mxu0 %v435
        %584 = vmatprep.subr.mxu0 %v440
        %585 = vmatpush1.msra.mxu0 %v439
        %586 = vmatprep.subr.mxu0 %v444
        %587 = vmatpush1.msra.mxu0 %v443
        %588 = vmatprep.subr.mxu0 %v448
        %589 = vmatpush1.msra.mxu0 %v447
        %590 = vmatprep.subr.mxu0 %v452
        %591 = vmatpush1.msra.mxu0 %v451
        %592 = vmatprep.subr.mxu0 %v456
        %593 = vmatpush1.msra.mxu0 %v455
        %594 = vmatprep.subr.mxu0 %v460
        %595 = vmatpush1.msra.mxu0 %v459
        %596 = vmatprep.subr.mxu0 %v464
        %597 = vmatpush1.msra.mxu0 %v463
        %598 = vmatprep.subr.mxu0 %v468
        %599 = vmatpush1.msra.mxu0 %v467
        %600 = vmatprep.subr.mxu0 %v472
        %601 = vmatpush1.msra.mxu0 %v471
        %602 = vmatprep.subr.mxu0 %v476
        %603 = vmatpush1.msra.mxu0 %v475
        %604 = vmatprep.subr.mxu0 %v480
        %605 = vmatpush1.msra.mxu0 %v479
        %606 = vmatprep.subr.mxu0 %v484
        %607 = vmatpush1.msra.mxu0 %v483
        %608 = vmatprep.subr.mxu0 %v488
        %609 = vmatpush1.msra.mxu0 %v487
        %610 = vmatprep.subr.mxu0 %v492
        %611 = vmatpush1.msra.mxu0 %v491
        %612 = vmatprep.subr.mxu0 %v496
        %613 = vmatpush1.msra.mxu0 %v495
        %614 = vmatprep.subr.mxu0 %v500
        %615 = vmatpush1.msra.mxu0 %v499
        %616 = vmatprep.subr.mxu0 %v504
        %617 = vmatpush1.msra.mxu0 %v503
        %618 = vmatprep.subr.mxu0 %v508
        %619 = vmatpush1.msra.mxu0 %v507
        %620 = vmatprep.subr.mxu0 %v512
        %621 = vmatpush1.msra.mxu0 %v511
        %622 = vmatprep.subr.mxu0 %v516
        %623 = vmatpush1.msra.mxu0 %v515
        %624 = vmatprep.subr.mxu0 %v520
        %625 = vmatpush1.msra.mxu0 %v519
        %626 = vmatprep.subr.mxu0 %v524
        %627 = vmatpush1.msra.mxu0 %v523
        %628 = vmatprep.subr.mxu0 %v528
        %629 = vmatpush1.msra.mxu0 %v527
        %630 = vmatprep.subr.mxu0 %v532
        %631 = vmatpush1.msra.mxu0 %v531
        %632 = vmatprep.mubr.f32.mxu0 %v544
        %633 = vmatmul.mubr.f32.gmra.mrb[0].mxu0 %v540
        %v634 = vpop.f32.mrb[0].mxu0
        %v635 = vadd.f32 %v551, %v634
        %v636 = vpop.f32.mrb[0].mxu0
        %v637 = vadd.f32 %v555, %v636
        %638 = vdwg.mxu0
        %639 = vmatprep.subr.mxu0 %v410
        %640 = vmatpush1.msra.mxu0 %v409
        %641 = vmatprep.subr.mxu0 %v414
        %642 = vmatpush1.msra.mxu0 %v413
        %643 = vmatprep.subr.mxu0 %v418
        %644 = vmatpush1.msra.mxu0 %v417
        %645 = vmatprep.subr.mxu0 %v422
        %646 = vmatpush1.msra.mxu0 %v421
        %647 = vmatprep.subr.mxu0 %v426
        %648 = vmatpush1.msra.mxu0 %v425
        %649 = vmatprep.subr.mxu0 %v430
        %650 = vmatpush1.msra.mxu0 %v429
        %651 = vmatprep.subr.mxu0 %v434
        %652 = vmatpush1.msra.mxu0 %v433
        %653 = vmatprep.subr.mxu0 %v438
        %654 = vmatpush1.msra.mxu0 %v437
        %655 = vmatprep.subr.mxu0 %v442
        %656 = vmatpush1.msra.mxu0 %v441
        %657 = vmatprep.subr.mxu0 %v446
        %658 = vmatpush1.msra.mxu0 %v445
        %659 = vmatprep.subr.mxu0 %v450
        %660 = vmatpush1.msra.mxu0 %v449
        %661 = vmatprep.subr.mxu0 %v454
        %662 = vmatpush1.msra.mxu0 %v453
        %663 = vmatprep.subr.mxu0 %v458
        %664 = vmatpush1.msra.mxu0 %v457
        %665 = vmatprep.subr.mxu0 %v462
        %666 = vmatpush1.msra.mxu0 %v461
        %667 = vmatprep.subr.mxu0 %v466
        %668 = vmatpush1.msra.mxu0 %v465
        %669 = vmatprep.subr.mxu0 %v470
        %670 = vmatpush1.msra.mxu0 %v469
        %671 = vmatprep.subr.mxu0 %v474
        %672 = vmatpush1.msra.mxu0 %v473
        %673 = vmatprep.subr.mxu0 %v478
        %674 = vmatpush1.msra.mxu0 %v477
        %675 = vmatprep.subr.mxu0 %v482
        %676 = vmatpush1.msra.mxu0 %v481
        %677 = vmatprep.subr.mxu0 %v486
        %678 = vmatpush1.msra.mxu0 %v485
        %679 = vmatprep.subr.mxu0 %v490
        %680 = vmatpush1.msra.mxu0 %v489
        %681 = vmatprep.subr.mxu0 %v494
        %682 = vmatpush1.msra.mxu0 %v493
        %683 = vmatprep.subr.mxu0 %v498
        %684 = vmatpush1.msra.mxu0 %v497
        %685 = vmatprep.subr.mxu0 %v502
        %686 = vmatpush1.msra.mxu0 %v501
        %687 = vmatprep.subr.mxu0 %v506
        %688 = vmatpush1.msra.mxu0 %v505
        %689 = vmatprep.subr.mxu0 %v510
        %690 = vmatpush1.msra.mxu0 %v509
        %691 = vmatprep.subr.mxu0 %v514
        %692 = vmatpush1.msra.mxu0 %v513
        %693 = vmatprep.subr.mxu0 %v518
        %694 = vmatpush1.msra.mxu0 %v517
        %695 = vmatprep.subr.mxu0 %v522
        %696 = vmatpush1.msra.mxu0 %v521
        %697 = vmatprep.subr.mxu0 %v526
        %698 = vmatpush1.msra.mxu0 %v525
        %699 = vmatprep.subr.mxu0 %v530
        %700 = vmatpush1.msra.mxu0 %v529
        %701 = vmatprep.subr.mxu0 %v534
        %702 = vmatpush1.msra.mxu0 %v533
        %703 = vmatprep.mubr.f32.mxu0 %v544
        %704 = vmatmul.mubr.f32.gmra.mrb[0].mxu0 %v540
        %v705 = vpop.f32.mrb[0].mxu0
        %v706 = vadd.f32 %v559, %v705
        %v707 = vpop.f32.mrb[0].mxu0
        %v708 = vadd.f32 %v563, %v707
        %709 = vdwg.mxu0
        %vm710 = vcmp.ge.f32.partialorder %v635, 0.0
        %vm711 = vcmp.ge.f32.partialorder %v637, 0.0
        %vm712 = vcmp.ge.f32.partialorder %v706, 0.0
        %vm713 = vcmp.ge.f32.partialorder %v708, 0.0
        %v714 = vmul.f32 %v635, 0.3
        %v715 = vmul.f32 %v637, 0.3
        %v716 = vmul.f32 %v706, 0.3
        %v717 = vmul.f32 %v708, 0.3
        %v718 = vsel %vm710, %v635, %v714
        %v719 = vsel %vm711, %v637, %v715
        %v720 = vsel %vm712, %v706, %v716
        %v721 = vsel %vm713, %v708, %v717
        %v722 = vld [vmem:[#allocation7] sm:$0xff]
        %v723 = vld [vmem:[#allocation7 + $0x8] sm:$0xff]
        %v724 = vld [vmem:[#allocation7 + $0x10] sm:$0xff]
        %v725 = vld [vmem:[#allocation7 + $0x18] sm:$0xff]
        %v726 = vld [vmem:[#allocation7 + $0x20] sm:$0xff]
        %v727 = vld [vmem:[#allocation7 + $0x28] sm:$0xff]
        %v728 = vld [vmem:[#allocation7 + $0x30] sm:$0xff]
        %v729 = vld [vmem:[#allocation7 + $0x38] sm:$0xff]
        %v730 = vld [vmem:[#allocation7 + $0x40] sm:$0xff]
        %v731 = vld [vmem:[#allocation7 + $0x48] sm:$0xff]
        %v732 = vld [vmem:[#allocation7 + $0x50] sm:$0xff]
        %v733 = vld [vmem:[#allocation7 + $0x58] sm:$0xff]
        %v734 = vld [vmem:[#allocation7 + $0x60] sm:$0xff]
        %v735 = vld [vmem:[#allocation7 + $0x68] sm:$0xff]
        %v736 = vld [vmem:[#allocation7 + $0x70] sm:$0xff]
        %v737 = vld [vmem:[#allocation7 + $0x78] sm:$0xff]
        %v738 = vld [vmem:[#allocation7 + $0x80] sm:$0xff]
        %v739 = vld [vmem:[#allocation7 + $0x88] sm:$0xff]
        %v740 = vld [vmem:[#allocation7 + $0x90] sm:$0xff]
        %v741 = vld [vmem:[#allocation7 + $0x98] sm:$0xff]
        %v742 = vld [vmem:[#allocation7 + $0xa0] sm:$0xff]
        %v743 = vld [vmem:[#allocation7 + $0xa8] sm:$0xff]
        %v744 = vld [vmem:[#allocation7 + $0xb0] sm:$0xff]
        %v745 = vld [vmem:[#allocation7 + $0xb8] sm:$0xff]
        %v746 = vld [vmem:[#allocation7 + $0xc0] sm:$0xff]
        %v747 = vld [vmem:[#allocation7 + $0xc8] sm:$0xff]
        %v748 = vld [vmem:[#allocation7 + $0xd0] sm:$0xff]
        %v749 = vld [vmem:[#allocation7 + $0xd8] sm:$0xff]
        %v750 = vld [vmem:[#allocation7 + $0xe0] sm:$0xff]
        %v751 = vld [vmem:[#allocation7 + $0xe8] sm:$0xff]
        %v752 = vld [vmem:[#allocation7 + $0xf0] sm:$0xff]
        %v753 = vld [vmem:[#allocation7 + $0xf8] sm:$0xff]
        %v754 = vld [vmem:[#allocation7 + $0x100] sm:$0xff]
        %v755 = vld [vmem:[#allocation7 + $0x108] sm:$0xff]
        %v756 = vld [vmem:[#allocation7 + $0x110] sm:$0xff]
        %v757 = vld [vmem:[#allocation7 + $0x118] sm:$0xff]
        %v758 = vld [vmem:[#allocation7 + $0x120] sm:$0xff]
        %v759 = vld [vmem:[#allocation7 + $0x128] sm:$0xff]
        %v760 = vld [vmem:[#allocation7 + $0x130] sm:$0xff]
        %v761 = vld [vmem:[#allocation7 + $0x138] sm:$0xff]
        %v762 = vld [vmem:[#allocation7 + $0x140] sm:$0xff]
        %v763 = vld [vmem:[#allocation7 + $0x148] sm:$0xff]
        %v764 = vld [vmem:[#allocation7 + $0x150] sm:$0xff]
        %v765 = vld [vmem:[#allocation7 + $0x158] sm:$0xff]
        %v766 = vld [vmem:[#allocation7 + $0x160] sm:$0xff]
        %v767 = vld [vmem:[#allocation7 + $0x168] sm:$0xff]
        %v768 = vld [vmem:[#allocation7 + $0x170] sm:$0xff]
        %v769 = vld [vmem:[#allocation7 + $0x178] sm:$0xff]
        %v770 = vld [vmem:[#allocation7 + $0x180] sm:$0xff]
        %v771 = vld [vmem:[#allocation7 + $0x188] sm:$0xff]
        %v772 = vld [vmem:[#allocation7 + $0x190] sm:$0xff]
        %v773 = vld [vmem:[#allocation7 + $0x198] sm:$0xff]
        %v774 = vld [vmem:[#allocation7 + $0x1a0] sm:$0xff]
        %v775 = vld [vmem:[#allocation7 + $0x1a8] sm:$0xff]
        %v776 = vld [vmem:[#allocation7 + $0x1b0] sm:$0xff]
        %v777 = vld [vmem:[#allocation7 + $0x1b8] sm:$0xff]
        %v778 = vld [vmem:[#allocation7 + $0x1c0] sm:$0xff]
        %v779 = vld [vmem:[#allocation7 + $0x1c8] sm:$0xff]
        %v780 = vld [vmem:[#allocation7 + $0x1d0] sm:$0xff]
        %v781 = vld [vmem:[#allocation7 + $0x1d8] sm:$0xff]
        %v782 = vld [vmem:[#allocation7 + $0x1e0] sm:$0xff]
        %v783 = vld [vmem:[#allocation7 + $0x1e8] sm:$0xff]
        %v784 = vld [vmem:[#allocation7 + $0x1f0] sm:$0xff]
        %v785 = vld [vmem:[#allocation7 + $0x1f8] sm:$0xff]
        %v786 = vld [vmem:[#allocation7 + $0x200] sm:$0xff]
        %v787 = vld [vmem:[#allocation7 + $0x208] sm:$0xff]
        %v788 = vld [vmem:[#allocation7 + $0x210] sm:$0xff]
        %v789 = vld [vmem:[#allocation7 + $0x218] sm:$0xff]
        %v790 = vld [vmem:[#allocation7 + $0x220] sm:$0xff]
        %v791 = vld [vmem:[#allocation7 + $0x228] sm:$0xff]
        %v792 = vld [vmem:[#allocation7 + $0x230] sm:$0xff]
        %v793 = vld [vmem:[#allocation7 + $0x238] sm:$0xff]
        %v794 = vld [vmem:[#allocation7 + $0x240] sm:$0xff]
        %v795 = vld [vmem:[#allocation7 + $0x248] sm:$0xff]
        %v796 = vld [vmem:[#allocation7 + $0x250] sm:$0xff]
        %v797 = vld [vmem:[#allocation7 + $0x258] sm:$0xff]
        %v798 = vld [vmem:[#allocation7 + $0x260] sm:$0xff]
        %v799 = vld [vmem:[#allocation7 + $0x268] sm:$0xff]
        %v800 = vld [vmem:[#allocation7 + $0x270] sm:$0xff]
        %v801 = vld [vmem:[#allocation7 + $0x278] sm:$0xff]
        %v802 = vld [vmem:[#allocation7 + $0x280] sm:$0xff]
        %v803 = vld [vmem:[#allocation7 + $0x288] sm:$0xff]
        %v804 = vld [vmem:[#allocation7 + $0x290] sm:$0xff]
        %v805 = vld [vmem:[#allocation7 + $0x298] sm:$0xff]
        %v806 = vld [vmem:[#allocation7 + $0x2a0] sm:$0xff]
        %v807 = vld [vmem:[#allocation7 + $0x2a8] sm:$0xff]
        %v808 = vld [vmem:[#allocation7 + $0x2b0] sm:$0xff]
        %v809 = vld [vmem:[#allocation7 + $0x2b8] sm:$0xff]
        %v810 = vld [vmem:[#allocation7 + $0x2c0] sm:$0xff]
        %v811 = vld [vmem:[#allocation7 + $0x2c8] sm:$0xff]
        %v812 = vld [vmem:[#allocation7 + $0x2d0] sm:$0xff]
        %v813 = vld [vmem:[#allocation7 + $0x2d8] sm:$0xff]
        %v814 = vld [vmem:[#allocation7 + $0x2e0] sm:$0xff]
        %v815 = vld [vmem:[#allocation7 + $0x2e8] sm:$0xff]
        %v816 = vld [vmem:[#allocation7 + $0x2f0] sm:$0xff]
        %v817 = vld [vmem:[#allocation7 + $0x2f8] sm:$0xff]
        %v818 = vld [vmem:[#allocation7 + $0x300] sm:$0xff]
        %v819 = vld [vmem:[#allocation7 + $0x308] sm:$0xff]
        %v820 = vld [vmem:[#allocation7 + $0x310] sm:$0xff]
        %v821 = vld [vmem:[#allocation7 + $0x318] sm:$0xff]
        %v822 = vld [vmem:[#allocation7 + $0x320] sm:$0xff]
        %v823 = vld [vmem:[#allocation7 + $0x328] sm:$0xff]
        %v824 = vld [vmem:[#allocation7 + $0x330] sm:$0xff]
        %v825 = vld [vmem:[#allocation7 + $0x338] sm:$0xff]
        %v826 = vld [vmem:[#allocation7 + $0x340] sm:$0xff]
        %v827 = vld [vmem:[#allocation7 + $0x348] sm:$0xff]
        %v828 = vld [vmem:[#allocation7 + $0x350] sm:$0xff]
        %v829 = vld [vmem:[#allocation7 + $0x358] sm:$0xff]
        %v830 = vld [vmem:[#allocation7 + $0x360] sm:$0xff]
        %v831 = vld [vmem:[#allocation7 + $0x368] sm:$0xff]
        %v832 = vld [vmem:[#allocation7 + $0x370] sm:$0xff]
        %v833 = vld [vmem:[#allocation7 + $0x378] sm:$0xff]
        %v834 = vld [vmem:[#allocation7 + $0x380] sm:$0xff]
        %v835 = vld [vmem:[#allocation7 + $0x388] sm:$0xff]
        %v836 = vld [vmem:[#allocation7 + $0x390] sm:$0xff]
        %v837 = vld [vmem:[#allocation7 + $0x398] sm:$0xff]
        %v838 = vld [vmem:[#allocation7 + $0x3a0] sm:$0xff]
        %v839 = vld [vmem:[#allocation7 + $0x3a8] sm:$0xff]
        %v840 = vld [vmem:[#allocation7 + $0x3b0] sm:$0xff]
        %v841 = vld [vmem:[#allocation7 + $0x3b8] sm:$0xff]
        %v842 = vld [vmem:[#allocation7 + $0x3c0] sm:$0xff]
        %v843 = vld [vmem:[#allocation7 + $0x3c8] sm:$0xff]
        %v844 = vld [vmem:[#allocation7 + $0x3d0] sm:$0xff]
        %v845 = vld [vmem:[#allocation7 + $0x3d8] sm:$0xff]
        %v846 = vld [vmem:[#allocation7 + $0x3e0] sm:$0xff]
        %v847 = vld [vmem:[#allocation7 + $0x3e8] sm:$0xff]
        %v848 = vld [vmem:[#allocation7 + $0x3f0] sm:$0xff]
        %v849 = vld [vmem:[#allocation7 + $0x3f8] sm:$0xff]
        %v850 = vld [vmem:[%s4] sm:$0x3]
        %v852 = vlaneseq
        %v853 = vshrl.u32 %v852, 7
        %v854 = vsub.s32 0, %v853
        %v855 = vrot.slane %v850, %v854
        %v856 = vlaneseq
        %v857 = vshrl.u32 %v856, 7
        %v858 = vsub.s32 1, %v857
        %v859 = vrot.slane %v850, %v858
        %862 = vmatprep.subr.mxu0 %v723
        %863 = vmatpush1.msra.mxu0 %v722
        %864 = vmatprep.subr.mxu0 %v725
        %865 = vmatpush1.msra.mxu0 %v724
        %866 = vmatprep.subr.mxu0 %v727
        %867 = vmatpush1.msra.mxu0 %v726
        %868 = vmatprep.subr.mxu0 %v729
        %869 = vmatpush1.msra.mxu0 %v728
        %870 = vmatprep.subr.mxu0 %v731
        %871 = vmatpush1.msra.mxu0 %v730
        %872 = vmatprep.subr.mxu0 %v733
        %873 = vmatpush1.msra.mxu0 %v732
        %874 = vmatprep.subr.mxu0 %v735
        %875 = vmatpush1.msra.mxu0 %v734
        %876 = vmatprep.subr.mxu0 %v737
        %877 = vmatpush1.msra.mxu0 %v736
        %878 = vmatprep.subr.mxu0 %v739
        %879 = vmatpush1.msra.mxu0 %v738
        %880 = vmatprep.subr.mxu0 %v741
        %881 = vmatpush1.msra.mxu0 %v740
        %882 = vmatprep.subr.mxu0 %v743
        %883 = vmatpush1.msra.mxu0 %v742
        %884 = vmatprep.subr.mxu0 %v745
        %885 = vmatpush1.msra.mxu0 %v744
        %886 = vmatprep.subr.mxu0 %v747
        %887 = vmatpush1.msra.mxu0 %v746
        %888 = vmatprep.subr.mxu0 %v749
        %889 = vmatpush1.msra.mxu0 %v748
        %890 = vmatprep.subr.mxu0 %v751
        %891 = vmatpush1.msra.mxu0 %v750
        %892 = vmatprep.subr.mxu0 %v753
        %893 = vmatpush1.msra.mxu0 %v752
        %894 = vmatprep.subr.mxu0 %v755
        %895 = vmatpush1.msra.mxu0 %v754
        %896 = vmatprep.subr.mxu0 %v757
        %897 = vmatpush1.msra.mxu0 %v756
        %898 = vmatprep.subr.mxu0 %v759
        %899 = vmatpush1.msra.mxu0 %v758
        %900 = vmatprep.subr.mxu0 %v761
        %901 = vmatpush1.msra.mxu0 %v760
        %902 = vmatprep.subr.mxu0 %v763
        %903 = vmatpush1.msra.mxu0 %v762
        %904 = vmatprep.subr.mxu0 %v765
        %905 = vmatpush1.msra.mxu0 %v764
        %906 = vmatprep.subr.mxu0 %v767
        %907 = vmatpush1.msra.mxu0 %v766
        %908 = vmatprep.subr.mxu0 %v769
        %909 = vmatpush1.msra.mxu0 %v768
        %910 = vmatprep.subr.mxu0 %v771
        %911 = vmatpush1.msra.mxu0 %v770
        %912 = vmatprep.subr.mxu0 %v773
        %913 = vmatpush1.msra.mxu0 %v772
        %914 = vmatprep.subr.mxu0 %v775
        %915 = vmatpush1.msra.mxu0 %v774
        %916 = vmatprep.subr.mxu0 %v777
        %917 = vmatpush1.msra.mxu0 %v776
        %918 = vmatprep.subr.mxu0 %v779
        %919 = vmatpush1.msra.mxu0 %v778
        %920 = vmatprep.subr.mxu0 %v781
        %921 = vmatpush1.msra.mxu0 %v780
        %922 = vmatprep.subr.mxu0 %v783
        %923 = vmatpush1.msra.mxu0 %v782
        %924 = vmatprep.subr.mxu0 %v785
        %925 = vmatpush1.msra.mxu0 %v784
        %926 = vmatprep.mubr.f32.mxu0 %v719
        %927 = vmatmul.mubr.f32.gmra.mrb[0].mxu0 %v718
        %v928 = vpop.f32.mrb[0].mxu0
        %v929 = vadd.f32 %v855, %v928
        %v930 = vpop.f32.mrb[0].mxu0
        %v931 = vadd.f32 %v859, %v930
        %932 = vdwg.mxu0
        %933 = vmatprep.subr.mxu0 %v787
        %934 = vmatpush1.msra.mxu0 %v786
        %935 = vmatprep.subr.mxu0 %v789
        %936 = vmatpush1.msra.mxu0 %v788
        %937 = vmatprep.subr.mxu0 %v791
        %938 = vmatpush1.msra.mxu0 %v790
        %939 = vmatprep.subr.mxu0 %v793
        %940 = vmatpush1.msra.mxu0 %v792
        %941 = vmatprep.subr.mxu0 %v795
        %942 = vmatpush1.msra.mxu0 %v794
        %943 = vmatprep.subr.mxu0 %v797
        %944 = vmatpush1.msra.mxu0 %v796
        %945 = vmatprep.subr.mxu0 %v799
        %946 = vmatpush1.msra.mxu0 %v798
        %947 = vmatprep.subr.mxu0 %v801
        %948 = vmatpush1.msra.mxu0 %v800
        %949 = vmatprep.subr.mxu0 %v803
        %950 = vmatpush1.msra.mxu0 %v802
        %951 = vmatprep.subr.mxu0 %v805
        %952 = vmatpush1.msra.mxu0 %v804
        %953 = vmatprep.subr.mxu0 %v807
        %954 = vmatpush1.msra.mxu0 %v806
        %955 = vmatprep.subr.mxu0 %v809
        %956 = vmatpush1.msra.mxu0 %v808
        %957 = vmatprep.subr.mxu0 %v811
        %958 = vmatpush1.msra.mxu0 %v810
        %959 = vmatprep.subr.mxu0 %v813
        %960 = vmatpush1.msra.mxu0 %v812
        %961 = vmatprep.subr.mxu0 %v815
        %962 = vmatpush1.msra.mxu0 %v814
        %963 = vmatprep.subr.mxu0 %v817
        %964 = vmatpush1.msra.mxu0 %v816
        %965 = vmatprep.subr.mxu0 %v819
        %966 = vmatpush1.msra.mxu0 %v818
        %967 = vmatprep.subr.mxu0 %v821
        %968 = vmatpush1.msra.mxu0 %v820
        %969 = vmatprep.subr.mxu0 %v823
        %970 = vmatpush1.msra.mxu0 %v822
        %971 = vmatprep.subr.mxu0 %v825
        %972 = vmatpush1.msra.mxu0 %v824
        %973 = vmatprep.subr.mxu0 %v827
        %974 = vmatpush1.msra.mxu0 %v826
        %975 = vmatprep.subr.mxu0 %v829
        %976 = vmatpush1.msra.mxu0 %v828
        %977 = vmatprep.subr.mxu0 %v831
        %978 = vmatpush1.msra.mxu0 %v830
        %979 = vmatprep.subr.mxu0 %v833
        %980 = vmatpush1.msra.mxu0 %v832
        %981 = vmatprep.subr.mxu0 %v835
        %982 = vmatpush1.msra.mxu0 %v834
        %983 = vmatprep.subr.mxu0 %v837
        %984 = vmatpush1.msra.mxu0 %v836
        %985 = vmatprep.subr.mxu0 %v839
        %986 = vmatpush1.msra.mxu0 %v838
        %987 = vmatprep.subr.mxu0 %v841
        %988 = vmatpush1.msra.mxu0 %v840
        %989 = vmatprep.subr.mxu0 %v843
        %990 = vmatpush1.msra.mxu0 %v842
        %991 = vmatprep.subr.mxu0 %v845
        %992 = vmatpush1.msra.mxu0 %v844
        %993 = vmatprep.subr.mxu0 %v847
        %994 = vmatpush1.msra.mxu0 %v846
        %995 = vmatprep.subr.mxu0 %v849
        %996 = vmatpush1.msra.mxu0 %v848
        %997 = vmatprep.mubr.f32.mxu0 %v721
        %998 = vmatmul.mubr.f32.gmra.mrb[0].mxu0 %v720
        %v999 = vpop.f32.mrb[0].mxu0
        %v1000 = vadd.f32 %v929, %v999
        %v1001 = vpop.f32.mrb[0].mxu0
        %v1002 = vadd.f32 %v931, %v1001
        %1003 = vdwg.mxu0
        %vm1004 = vcmp.ge.f32.partialorder %v1000, 0.0
        %vm1005 = vcmp.ge.f32.partialorder %v1002, 0.0
        %v1006 = vmul.f32 %v1000, 0.3
        %v1007 = vmul.f32 %v1002, 0.3
        %v1008 = vsel %vm1004, %v1000, %v1006
        %v1009 = vsel %vm1005, %v1002, %v1007
        %v1010 = vld [vmem:[#allocation8] sm:$0xff]
        %v1011 = vld [vmem:[#allocation8 + $0x8] sm:$0xff]
        %v1012 = vld [vmem:[#allocation8 + $0x10] sm:$0xff]
        %v1013 = vld [vmem:[#allocation8 + $0x18] sm:$0xff]
        %v1014 = vld [vmem:[#allocation8 + $0x20] sm:$0xff]
        %v1015 = vld [vmem:[#allocation8 + $0x28] sm:$0xff]
        %v1016 = vld [vmem:[#allocation8 + $0x30] sm:$0xff]
        %v1017 = vld [vmem:[#allocation8 + $0x38] sm:$0xff]
        %v1018 = vld [vmem:[#allocation8 + $0x40] sm:$0xff]
        %v1019 = vld [vmem:[#allocation8 + $0x48] sm:$0xff]
        %v1020 = vld [vmem:[#allocation8 + $0x50] sm:$0xff]
        %v1021 = vld [vmem:[#allocation8 + $0x58] sm:$0xff]
        %v1022 = vld [vmem:[#allocation8 + $0x60] sm:$0xff]
        %v1023 = vld [vmem:[#allocation8 + $0x68] sm:$0xff]
        %v1024 = vld [vmem:[#allocation8 + $0x70] sm:$0xff]
        %v1025 = vld [vmem:[#allocation8 + $0x78] sm:$0xff]
        %v1026 = vld [vmem:[#allocation8 + $0x80] sm:$0xff]
        %v1027 = vld [vmem:[#allocation8 + $0x88] sm:$0xff]
        %v1028 = vld [vmem:[#allocation8 + $0x90] sm:$0xff]
        %v1029 = vld [vmem:[#allocation8 + $0x98] sm:$0xff]
        %v1030 = vld [vmem:[#allocation8 + $0xa0] sm:$0xff]
        %v1031 = vld [vmem:[#allocation8 + $0xa8] sm:$0xff]
        %v1032 = vld [vmem:[#allocation8 + $0xb0] sm:$0xff]
        %v1033 = vld [vmem:[#allocation8 + $0xb8] sm:$0xff]
        %v1034 = vld [vmem:[#allocation8 + $0xc0] sm:$0xff]
        %v1035 = vld [vmem:[#allocation8 + $0xc8] sm:$0xff]
        %v1036 = vld [vmem:[#allocation8 + $0xd0] sm:$0xff]
        %v1037 = vld [vmem:[#allocation8 + $0xd8] sm:$0xff]
        %v1038 = vld [vmem:[#allocation8 + $0xe0] sm:$0xff]
        %v1039 = vld [vmem:[#allocation8 + $0xe8] sm:$0xff]
        %v1040 = vld [vmem:[#allocation8 + $0xf0] sm:$0xff]
        %v1041 = vld [vmem:[#allocation8 + $0xf8] sm:$0xff]
        %v1042 = vld [vmem:[#allocation8 + $0x100] sm:$0xff]
        %v1043 = vld [vmem:[#allocation8 + $0x108] sm:$0xff]
        %v1044 = vld [vmem:[#allocation8 + $0x110] sm:$0xff]
        %v1045 = vld [vmem:[#allocation8 + $0x118] sm:$0xff]
        %v1046 = vld [vmem:[#allocation8 + $0x120] sm:$0xff]
        %v1047 = vld [vmem:[#allocation8 + $0x128] sm:$0xff]
        %v1048 = vld [vmem:[#allocation8 + $0x130] sm:$0xff]
        %v1049 = vld [vmem:[#allocation8 + $0x138] sm:$0xff]
        %v1050 = vld [vmem:[#allocation8 + $0x140] sm:$0xff]
        %v1051 = vld [vmem:[#allocation8 + $0x148] sm:$0xff]
        %v1052 = vld [vmem:[#allocation8 + $0x150] sm:$0xff]
        %v1053 = vld [vmem:[#allocation8 + $0x158] sm:$0xff]
        %v1054 = vld [vmem:[#allocation8 + $0x160] sm:$0xff]
        %v1055 = vld [vmem:[#allocation8 + $0x168] sm:$0xff]
        %v1056 = vld [vmem:[#allocation8 + $0x170] sm:$0xff]
        %v1057 = vld [vmem:[#allocation8 + $0x178] sm:$0xff]
        %v1058 = vld [vmem:[#allocation8 + $0x180] sm:$0xff]
        %v1059 = vld [vmem:[#allocation8 + $0x188] sm:$0xff]
        %v1060 = vld [vmem:[#allocation8 + $0x190] sm:$0xff]
        %v1061 = vld [vmem:[#allocation8 + $0x198] sm:$0xff]
        %v1062 = vld [vmem:[#allocation8 + $0x1a0] sm:$0xff]
        %v1063 = vld [vmem:[#allocation8 + $0x1a8] sm:$0xff]
        %v1064 = vld [vmem:[#allocation8 + $0x1b0] sm:$0xff]
        %v1065 = vld [vmem:[#allocation8 + $0x1b8] sm:$0xff]
        %v1066 = vld [vmem:[#allocation8 + $0x1c0] sm:$0xff]
        %v1067 = vld [vmem:[#allocation8 + $0x1c8] sm:$0xff]
        %v1068 = vld [vmem:[#allocation8 + $0x1d0] sm:$0xff]
        %v1069 = vld [vmem:[#allocation8 + $0x1d8] sm:$0xff]
        %v1070 = vld [vmem:[#allocation8 + $0x1e0] sm:$0xff]
        %v1071 = vld [vmem:[#allocation8 + $0x1e8] sm:$0xff]
        %v1072 = vld [vmem:[#allocation8 + $0x1f0] sm:$0xff]
        %v1073 = vld [vmem:[#allocation8 + $0x1f8] sm:$0xff]
        %v1074 = vld [vmem:[%s6] sm:$0x3]
        %v1076 = vlaneseq
        %v1077 = vshrl.u32 %v1076, 7
        %v1078 = vsub.s32 0, %v1077
        %v1079 = vrot.slane %v1074, %v1078
        %v1080 = vlaneseq
        %v1081 = vshrl.u32 %v1080, 7
        %v1082 = vsub.s32 1, %v1081
        %v1083 = vrot.slane %v1074, %v1082
        %1086 = vmatprep.subr.mxu0 %v1011
        %1087 = vmatpush1.msra.mxu0 %v1010
        %1088 = vmatprep.subr.mxu0 %v1013
        %1089 = vmatpush1.msra.mxu0 %v1012
        %1090 = vmatprep.subr.mxu0 %v1015
        %1091 = vmatpush1.msra.mxu0 %v1014
        %1092 = vmatprep.subr.mxu0 %v1017
        %1093 = vmatpush1.msra.mxu0 %v1016
        %1094 = vmatprep.subr.mxu0 %v1019
        %1095 = vmatpush1.msra.mxu0 %v1018
        %1096 = vmatprep.subr.mxu0 %v1021
        %1097 = vmatpush1.msra.mxu0 %v1020
        %1098 = vmatprep.subr.mxu0 %v1023
        %1099 = vmatpush1.msra.mxu0 %v1022
        %1100 = vmatprep.subr.mxu0 %v1025
        %1101 = vmatpush1.msra.mxu0 %v1024
        %1102 = vmatprep.subr.mxu0 %v1027
        %1103 = vmatpush1.msra.mxu0 %v1026
        %1104 = vmatprep.subr.mxu0 %v1029
        %1105 = vmatpush1.msra.mxu0 %v1028
        %1106 = vmatprep.subr.mxu0 %v1031
        %1107 = vmatpush1.msra.mxu0 %v1030
        %1108 = vmatprep.subr.mxu0 %v1033
        %1109 = vmatpush1.msra.mxu0 %v1032
        %1110 = vmatprep.subr.mxu0 %v1035
        %1111 = vmatpush1.msra.mxu0 %v1034
        %1112 = vmatprep.subr.mxu0 %v1037
        %1113 = vmatpush1.msra.mxu0 %v1036
        %1114 = vmatprep.subr.mxu0 %v1039
        %1115 = vmatpush1.msra.mxu0 %v1038
        %1116 = vmatprep.subr.mxu0 %v1041
        %1117 = vmatpush1.msra.mxu0 %v1040
        %1118 = vmatprep.subr.mxu0 %v1043
        %1119 = vmatpush1.msra.mxu0 %v1042
        %1120 = vmatprep.subr.mxu0 %v1045
        %1121 = vmatpush1.msra.mxu0 %v1044
        %1122 = vmatprep.subr.mxu0 %v1047
        %1123 = vmatpush1.msra.mxu0 %v1046
        %1124 = vmatprep.subr.mxu0 %v1049
        %1125 = vmatpush1.msra.mxu0 %v1048
        %1126 = vmatprep.subr.mxu0 %v1051
        %1127 = vmatpush1.msra.mxu0 %v1050
        %1128 = vmatprep.subr.mxu0 %v1053
        %1129 = vmatpush1.msra.mxu0 %v1052
        %1130 = vmatprep.subr.mxu0 %v1055
        %1131 = vmatpush1.msra.mxu0 %v1054
        %1132 = vmatprep.subr.mxu0 %v1057
        %1133 = vmatpush1.msra.mxu0 %v1056
        %1134 = vmatprep.subr.mxu0 %v1059
        %1135 = vmatpush1.msra.mxu0 %v1058
        %1136 = vmatprep.subr.mxu0 %v1061
        %1137 = vmatpush1.msra.mxu0 %v1060
        %1138 = vmatprep.subr.mxu0 %v1063
        %1139 = vmatpush1.msra.mxu0 %v1062
        %1140 = vmatprep.subr.mxu0 %v1065
        %1141 = vmatpush1.msra.mxu0 %v1064
        %1142 = vmatprep.subr.mxu0 %v1067
        %1143 = vmatpush1.msra.mxu0 %v1066
        %1144 = vmatprep.subr.mxu0 %v1069
        %1145 = vmatpush1.msra.mxu0 %v1068
        %1146 = vmatprep.subr.mxu0 %v1071
        %1147 = vmatpush1.msra.mxu0 %v1070
        %1148 = vmatprep.subr.mxu0 %v1073
        %1149 = vmatpush1.msra.mxu0 %v1072
        %1150 = vmatprep.mubr.f32.mxu0 %v1009
        %1151 = vmatmul.mubr.f32.gmra.mrb[0].mxu0 %v1008
        %v1152 = vpop.f32.mrb[0].mxu0
        %v1153 = vadd.f32 %v1079, %v1152
        %v1154 = vpop.f32.mrb[0].mxu0
        %v1155 = vadd.f32 %v1083, %v1154
        %1156 = vdwg.mxu0
        %vm1157 = vcmp.ge.f32.partialorder %v1153, 0.0
        %vm1158 = vcmp.ge.f32.partialorder %v1155, 0.0
        %v1159 = vmul.f32 %v1153, 0.3
        %v1160 = vmul.f32 %v1155, 0.3
        %v1161 = vsel %vm1157, %v1153, %v1159
        %v1162 = vsel %vm1158, %v1155, %v1160
        %v1163 = vld [vmem:[#allocation10] sm:$0xff]
        %v1164 = vld [vmem:[#allocation10 + $0x8] sm:$0xff]
        %v1165 = vld [vmem:[#allocation10 + $0x10] sm:$0xff]
        %v1166 = vld [vmem:[#allocation10 + $0x18] sm:$0xff]
        %v1167 = vld [vmem:[#allocation10 + $0x20] sm:$0xff]
        %v1168 = vld [vmem:[#allocation10 + $0x28] sm:$0xff]
        %v1169 = vld [vmem:[#allocation10 + $0x30] sm:$0xff]
        %v1170 = vld [vmem:[#allocation10 + $0x38] sm:$0xff]
        %v1171 = vld [vmem:[#allocation10 + $0x40] sm:$0xff]
        %v1172 = vld [vmem:[#allocation10 + $0x48] sm:$0xff]
        %v1173 = vld [vmem:[#allocation10 + $0x50] sm:$0xff]
        %v1174 = vld [vmem:[#allocation10 + $0x58] sm:$0xff]
        %v1175 = vld [vmem:[#allocation10 + $0x60] sm:$0xff]
        %v1176 = vld [vmem:[#allocation10 + $0x68] sm:$0xff]
        %v1177 = vld [vmem:[#allocation10 + $0x70] sm:$0xff]
        %v1178 = vld [vmem:[#allocation10 + $0x78] sm:$0xff]
        %v1179 = vld [vmem:[#allocation10 + $0x80] sm:$0xff]
        %v1180 = vld [vmem:[#allocation10 + $0x88] sm:$0xff]
        %v1181 = vld [vmem:[#allocation10 + $0x90] sm:$0xff]
        %v1182 = vld [vmem:[#allocation10 + $0x98] sm:$0xff]
        %v1183 = vld [vmem:[#allocation10 + $0xa0] sm:$0xff]
        %v1184 = vld [vmem:[#allocation10 + $0xa8] sm:$0xff]
        %v1185 = vld [vmem:[#allocation10 + $0xb0] sm:$0xff]
        %v1186 = vld [vmem:[#allocation10 + $0xb8] sm:$0xff]
        %v1187 = vld [vmem:[#allocation10 + $0xc0] sm:$0xff]
        %v1188 = vld [vmem:[#allocation10 + $0xc8] sm:$0xff]
        %v1189 = vld [vmem:[#allocation10 + $0xd0] sm:$0xff]
        %v1190 = vld [vmem:[#allocation10 + $0xd8] sm:$0xff]
        %v1191 = vld [vmem:[#allocation10 + $0xe0] sm:$0xff]
        %v1192 = vld [vmem:[#allocation10 + $0xe8] sm:$0xff]
        %v1193 = vld [vmem:[#allocation10 + $0xf0] sm:$0xff]
        %v1194 = vld [vmem:[#allocation10 + $0xf8] sm:$0xff]
        %v1195 = vld [vmem:[%s8] sm:$0x1]
        %1196 = vmatprep.subr.mxu0 0.0
        %1197 = vmatpush1.msra.mxu0 %v1163
        %1198 = vmatprep.subr.mxu0 0.0
        %1199 = vmatpush1.msra.mxu0 %v1164
        %1200 = vmatprep.subr.mxu0 0.0
        %1201 = vmatpush1.msra.mxu0 %v1165
        %1202 = vmatprep.subr.mxu0 0.0
        %1203 = vmatpush1.msra.mxu0 %v1166
        %1204 = vmatprep.subr.mxu0 0.0
        %1205 = vmatpush1.msra.mxu0 %v1167
        %1206 = vmatprep.subr.mxu0 0.0
        %1207 = vmatpush1.msra.mxu0 %v1168
        %1208 = vmatprep.subr.mxu0 0.0
        %1209 = vmatpush1.msra.mxu0 %v1169
        %1210 = vmatprep.subr.mxu0 0.0
        %1211 = vmatpush1.msra.mxu0 %v1170
        %1212 = vmatprep.subr.mxu0 0.0
        %1213 = vmatpush1.msra.mxu0 %v1171
        %1214 = vmatprep.subr.mxu0 0.0
        %1215 = vmatpush1.msra.mxu0 %v1172
        %1216 = vmatprep.subr.mxu0 0.0
        %1217 = vmatpush1.msra.mxu0 %v1173
        %1218 = vmatprep.subr.mxu0 0.0
        %1219 = vmatpush1.msra.mxu0 %v1174
        %1220 = vmatprep.subr.mxu0 0.0
        %1221 = vmatpush1.msra.mxu0 %v1175
        %1222 = vmatprep.subr.mxu0 0.0
        %1223 = vmatpush1.msra.mxu0 %v1176
        %1224 = vmatprep.subr.mxu0 0.0
        %1225 = vmatpush1.msra.mxu0 %v1177
        %1226 = vmatprep.subr.mxu0 0.0
        %1227 = vmatpush1.msra.mxu0 %v1178
        %1228 = vmatprep.subr.mxu0 0.0
        %1229 = vmatpush1.msra.mxu0 %v1179
        %1230 = vmatprep.subr.mxu0 0.0
        %1231 = vmatpush1.msra.mxu0 %v1180
        %1232 = vmatprep.subr.mxu0 0.0
        %1233 = vmatpush1.msra.mxu0 %v1181
        %1234 = vmatprep.subr.mxu0 0.0
        %1235 = vmatpush1.msra.mxu0 %v1182
        %1236 = vmatprep.subr.mxu0 0.0
        %1237 = vmatpush1.msra.mxu0 %v1183
        %1238 = vmatprep.subr.mxu0 0.0
        %1239 = vmatpush1.msra.mxu0 %v1184
        %1240 = vmatprep.subr.mxu0 0.0
        %1241 = vmatpush1.msra.mxu0 %v1185
        %1242 = vmatprep.subr.mxu0 0.0
        %1243 = vmatpush1.msra.mxu0 %v1186
        %1244 = vmatprep.subr.mxu0 0.0
        %1245 = vmatpush1.msra.mxu0 %v1187
        %1246 = vmatprep.subr.mxu0 0.0
        %1247 = vmatpush1.msra.mxu0 %v1188
        %1248 = vmatprep.subr.mxu0 0.0
        %1249 = vmatpush1.msra.mxu0 %v1189
        %1250 = vmatprep.subr.mxu0 0.0
        %1251 = vmatpush1.msra.mxu0 %v1190
        %1252 = vmatprep.subr.mxu0 0.0
        %1253 = vmatpush1.msra.mxu0 %v1191
        %1254 = vmatprep.subr.mxu0 0.0
        %1255 = vmatpush1.msra.mxu0 %v1192
        %1256 = vmatprep.subr.mxu0 0.0
        %1257 = vmatpush1.msra.mxu0 %v1193
        %1258 = vmatprep.subr.mxu0 0.0
        %1259 = vmatpush1.msra.mxu0 %v1194
        %1260 = vmatprep.mubr.f32.mxu0 %v1162
        %1261 = vmatmul.mubr.f32.gmra.mrb[0].mxu0 %v1161
        %v1262 = vpop.f32.mrb[0].mxu0
        %v1263 = vadd.f32 %v1195, %v1262
        %v1264 = vpop.f32.mrb[0].mxu0
        %1265 = vdwg.mxu0
        %1266 = vst [vmem:[%s405] sm:$0x1] %v1263
        %s1267 = sand.u32 %s230, 1
        %s1268 = scalar_lea.sflag [#allocation4], %s1267
        %s1269 = sand.u32 %s230, 1
        %s1270 = scalar_lea.vmem [#allocation11], %s1269
        // Predicated region
        $region77: #{tpu_custom_call.1} parent=55 // pred_check
          %p1271 = pneg %p240
        $region78: #{tpu_custom_call.1} parent=55 // pred_check_branch
          %1273 = sbr.rel (%p1271) target = $region80
        $region79: #{tpu_custom_call.1} parent=55 // pred_region
          %s1275 = ssub.s32 16, 16
          %1276 = vsyncadd %s1268, %s1275
          %s1277 = smul.addr %s28, 16
          %s1278 = scalar_lea.hbm %s9, %s1277
          %s1280 = sshll.u32 %s1270, 4
          %s1281 = int_to_ptr.vmem [resolvable:$true] %s1280
          %1283 = dma.vmem_to_hbm [thread:$0]  %s1281, 16, %s1278, %s1268
        $region80: #{tpu_custom_call.1} parent=55 // pred_fallthru
          _
      $region56: #{tpu_custom_call.1} parent=5 // pred_fallthru
        _
      %p1284 = scmp.le.s32.totalorder 2, %s23
      // Predicated region
      $region81: #{tpu_custom_call.1} parent=5 // pred_check
        %p1285 = pneg %p1284
      $region82: #{tpu_custom_call.1} parent=5 // pred_check_branch
        %1287 = sbr.rel (%p1285) target = $region84
      $region83: #{tpu_custom_call.1} parent=5 // pred_region
        %s1288 = ssub.s32 %s23, 2
        // Predicated region
        $region85: #{tpu_custom_call.1} parent=83 // pred_check
          %p1289 = pneg %p246
        $region86: #{tpu_custom_call.1} parent=83 // pred_check_branch
          %1291 = sbr.rel (%p1289) target = $region88
        $region87: #{tpu_custom_call.1} parent=83 // pred_region
          %s1292 = sand.u32 %s231, 1
          %s1293 = scalar_lea.sflag [#allocation4], %s1292
          %s1294 = sand.u32 %s231, 1
          %s1295 = scalar_lea.vmem [#allocation11], %s1294
          %1296 = dma.done %s1293, 16
        $region88: #{tpu_custom_call.1} parent=83 // pred_fallthru
          _
      $region84: #{tpu_custom_call.1} parent=5 // pred_fallthru
        _
    $region6: #{tpu_custom_call.1} parent=1 // loop_footer
      %s27 = sadd.s32 1, %s23
    $region7: #{tpu_custom_call.1} parent=1 // loop_footer_branch
      %22 = sbr.rel target = $region3
    $region8: #{tpu_custom_call.1} parent=1 // loop_exit
      _
    %1297 = vsyncpa [#allocation3], 1
    %s1298 = scalar_lea.sflag [#allocation3], 1
    %1299 = vsyncpa %s1298, 1
    %1300 = vsyncpa [#allocation6], 1
    %1301 = vsyncpa [#allocation9], 1
    %1302 = vsyncpa [#allocation4], 1
    %s1303 = scalar_lea.sflag [#allocation4], 1
    %1304 = vsyncpa %s1303, 1

</llo_original>
